<compile_context>
chip_gen: v7x
topology: tpu7x:2x2x1
jax: 0.10.0
libtpu: 0.0.40
codegen_flags: <defaults>
</compile_context>

<pallas_src>
import functools
import math

import jax
import jax.numpy as jnp
from jax.experimental import pallas as pl
from jax.experimental.pallas import tpu as pltpu

# ---------------- config (small, consistent with the module) ----------------
VOCAB = 50
NUM_LAYERS = 2
EMBED_DIM = 32
HIDDEN = 64
NUM_HEADS = 4
MAX_SEQ = 64
THETA = 10000.0
HEAD_DIM = EMBED_DIM // NUM_HEADS
LN_EPS = 1e-5  # PyTorch nn.LayerNorm default

# Matmul operand dtype. float32 keeps numerics closest to the PyTorch reference at these toy
# sizes; flip to jnp.bfloat16 on v6e/v7x at realistic sizes for MXU-native rate (accumulation
# stays float32 via preferred_element_type). Element-wise math stays float32 (v5e-safe).
MATMUL_DTYPE = jnp.float32


# ---------------- in-kernel helpers ----------------

def _layernorm(x, g, b, eps=LN_EPS):
    mean = jnp.mean(x, axis=-1, keepdims=True)
    xc = x - mean
    var = jnp.mean(xc * xc, axis=-1, keepdims=True)
    return xc * jax.lax.rsqrt(var + eps) * g + b


# ---------------- fused decoder kernel ----------------
# grid = (B, NUM_LAYERS); one batch per "parallel" b-step, layers iterate on the
# "arbitrary" l-axis with the activations held in a VMEM scratch.

def _decoder_kernel(x_ref, ln1g_ref, ln1b_ref, wqkv_ref, bqkv_ref, wo_ref, bo_ref,
                    ln2g_ref, ln2b_ref, w1_ref, b1_ref, w2_ref, b2_ref,
                    cos_ref, sin_ref, outg_ref, outb_ref,
                    o_ref, x_sc, *, num_heads, head_dim, scale):
    l = pl.program_id(1)

    @pl.when(l == 0)
    def _():
        x_sc[...] = x_ref[...].astype(jnp.float32)

    S, D = x_sc.shape
    x = x_sc[...]

    # ---- attention sub-block:  x = x + Wo(attn(rope(Wqkv(LN1(x))))) ----
    h = _layernorm(x, ln1g_ref[0], ln1b_ref[0])
    qkv = jnp.dot(h.astype(MATMUL_DTYPE), wqkv_ref[0].astype(MATMUL_DTYPE),
                  preferred_element_type=jnp.float32) + bqkv_ref[0]
    q = qkv[:, 0:D]
    k = qkv[:, D:2 * D]
    v = qkv[:, 2 * D:3 * D]

    # Interleaved (LLaMA-style) rotary: out = x * cos_il + pair_swap(x) * sin_signed.
    # pair_swap (x[...,2i] <-> x[...,2i+1]) is a (D, D) permutation matmul on the MXU,
    # built in-kernel from iotas (robust, no 2-wide minor-dim reshapes).
    r_i = jax.lax.broadcasted_iota(jnp.int32, (D, D), 0)
    c_i = jax.lax.broadcasted_iota(jnp.int32, (D, D), 1)
    partner = r_i + 1 - 2 * jnp.bitwise_and(r_i, 1)
    swap_p = (c_i == partner).astype(jnp.float32)
    cos = cos_ref[...]   # (S, D), cos duplicated per pair, tiled over heads
    sin = sin_ref[...]   # (S, D), [-sin, +sin] interleaved, tiled over heads

    def rope(t):
        swapped = jnp.dot(t, swap_p, preferred_element_type=jnp.float32)
        return t * cos + swapped * sin

    q = rope(q) * scale          # fold 1/sqrt(Dh) into q (cheaper than scaling scores)
    k = rope(k)

    # Causal softmax attention; all heads of this batch stay in VMEM. Per-head outputs
    # are folded straight through the matching row-slice of Wo (no concat / transpose).
    row = jax.lax.broadcasted_iota(jnp.int32, (S, S), 0)
    col = jax.lax.broadcasted_iota(jnp.int32, (S, S), 1)
    causal = col <= row
    wo = wo_ref[0]
    attn_proj = None
    for hd in range(num_heads):
        sl = slice(hd * head_dim, (hd + 1) * head_dim)
        qh = q[:, sl]
        kh = k[:, sl]
        vh = v[:, sl]
        s = jnp.dot(qh.astype(MATMUL_DTYPE), kh.astype(MATMUL_DTYPE).T,
                    preferred_element_type=jnp.float32)
        s = jnp.where(causal, s, -1e30)
        m = jnp.max(s, axis=-1, keepdims=True)
        p = jnp.exp(s - m)
        denom = jnp.sum(p, axis=-1, keepdims=True)
        o_h = jnp.dot(p.astype(MATMUL_DTYPE), vh.astype(MATMUL_DTYPE),
                      preferred_element_type=jnp.float32)
        o_h = o_h * pl.reciprocal(denom, approx=True)
        contrib = jnp.dot(o_h.astype(MATMUL_DTYPE),
                          wo[sl, :].astype(MATMUL_DTYPE),
                          preferred_element_type=jnp.float32)
        attn_proj = contrib if attn_proj is None else attn_proj + contrib
    attn_proj = attn_proj + bo_ref[0]
    x = x + attn_proj            # dropout on skip path is identity (eval)

    # ---- feedforward sub-block:  x = x + W2(GELU(W1(LN2(x)))) ----
    h2 = _layernorm(x, ln2g_ref[0], ln2b_ref[0])
    f = jnp.dot(h2.astype(MATMUL_DTYPE), w1_ref[0].astype(MATMUL_DTYPE),
                preferred_element_type=jnp.float32) + b1_ref[0]
    f = jax.nn.gelu(f, approximate=True)
    f = jnp.dot(f.astype(MATMUL_DTYPE), w2_ref[0].astype(MATMUL_DTYPE),
                preferred_element_type=jnp.float32) + b2_ref[0]
    x = x + f

    x_sc[...] = x

    @pl.when(l == pl.num_programs(1) - 1)
    def _():
        o_ref[...] = _layernorm(x, outg_ref[...], outb_ref[...]).astype(o_ref.dtype)


def fused_decoder_layers(x, stacked, cos_full, sin_full, out_g, out_b, *, B, S):
    D, H = EMBED_DIM, HIDDEN
    L = NUM_LAYERS
    scale = 1.0 / math.sqrt(HEAD_DIM)

    wmap = lambda b, l: (l, 0, 0)   # per-layer stacked weights
    cmap = lambda b, l: (0, 0)      # constants shared across grid
    xmap = lambda b, l: (b, 0)      # per-batch activation slab

    kernel = functools.partial(_decoder_kernel, num_heads=NUM_HEADS,
                               head_dim=HEAD_DIM, scale=scale)
    return pl.pallas_call(
        kernel,
        out_shape=jax.ShapeDtypeStruct((B * S, D), jnp.float32),
        grid=(B, L),
        in_specs=[
            pl.BlockSpec((S, D), xmap),             # x (read at l==0)
            pl.BlockSpec((1, 1, D), wmap),          # ln1_g
            pl.BlockSpec((1, 1, D), wmap),          # ln1_b
            pl.BlockSpec((1, D, 3 * D), wmap),      # wqkv (fused q|k|v)
            pl.BlockSpec((1, 1, 3 * D), wmap),      # bqkv
            pl.BlockSpec((1, D, D), wmap),          # wo
            pl.BlockSpec((1, 1, D), wmap),          # bo
            pl.BlockSpec((1, 1, D), wmap),          # ln2_g
            pl.BlockSpec((1, 1, D), wmap),          # ln2_b
            pl.BlockSpec((1, D, H), wmap),          # w1
            pl.BlockSpec((1, 1, H), wmap),          # b1
            pl.BlockSpec((1, H, D), wmap),          # w2
            pl.BlockSpec((1, 1, D), wmap),          # b2
            pl.BlockSpec((S, D), cmap),             # rotary cos (interleaved, head-tiled)
            pl.BlockSpec((S, D), cmap),             # rotary sin (signed interleaved, head-tiled)
            pl.BlockSpec((1, D), cmap),             # output-norm gamma
            pl.BlockSpec((1, D), cmap),             # output-norm beta
        ],
        out_specs=pl.BlockSpec((S, D), xmap),
        scratch_shapes=[pltpu.VMEM((S, D), jnp.float32)],
        compiler_params=pltpu.CompilerParams(
            dimension_semantics=("parallel", "arbitrary")),
    )(x,
      stacked["ln1_g"], stacked["ln1_b"],
      stacked["wqkv"], stacked["bqkv"],
      stacked["wo"], stacked["bo"],
      stacked["ln2_g"], stacked["ln2_b"],
      stacked["w1"], stacked["b1"],
      stacked["w2"], stacked["b2"],
      cos_full, sin_full,
      out_g.reshape(1, D), out_b.reshape(1, D))


# ---------------- host-side: rotary tables, params, forward ----------------

def precompute_rotary(head_dim, end, theta):
    # equivalent of precompute_freqs_cis, as (cos, sin) over pair frequencies
    freqs = 1.0 / (theta ** (jnp.arange(0, head_dim, 2, dtype=jnp.float32) / head_dim))
    t = jnp.arange(end, dtype=jnp.float32)
    ang = jnp.outer(t, freqs)                      # (end, head_dim // 2)
    return jnp.cos(ang), jnp.sin(ang)


def init_params(key):
    L, D, H = NUM_LAYERS, EMBED_DIM, HIDDEN
    keys = jax.random.split(key, 10)

    def w(k, shape):
        return jax.random.normal(k, shape, jnp.float32) * 0.02

    params = {
        "embedding": w(keys[0], (VOCAB, D)),
        "out_g": jnp.ones((D,), jnp.float32),
        "out_b": jnp.zeros((D,), jnp.float32),
        "stacked": {
            "ln1_g": jnp.ones((L, 1, D), jnp.float32),
            "ln1_b": jnp.zeros((L, 1, D), jnp.float32),
            "ln2_g": jnp.ones((L, 1, D), jnp.float32),
            "ln2_b": jnp.zeros((L, 1, D), jnp.float32),
            "wqkv": w(keys[1], (L, D, 3 * D)),
            "bqkv": w(keys[2], (L, 1, 3 * D)),
            "wo": w(keys[3], (L, D, D)),
            "bo": w(keys[4], (L, 1, D)),
            "w1": w(keys[5], (L, D, H)),
            "b1": w(keys[6], (L, 1, H)),
            "w2": w(keys[7], (L, H, D)),
            "b2": w(keys[8], (L, 1, D)),
        },
    }
    return params


def decoder_forward(tokens, params, rot_cos, rot_sin):
    B, S = tokens.shape
    D, Dh = EMBED_DIM, HEAD_DIM
    x = jnp.take(params["embedding"], tokens, axis=0).reshape(B * S, D)

    # Build lane-aligned rotary tables: cos duplicated per interleaved pair, sin with
    # alternating sign, both tiled across heads so they broadcast over (S, D) q/k slabs.
    cos_b, sin_b = rot_cos[:S], rot_sin[:S]                                   # (S, Dh//2)
    cos_il = jnp.repeat(cos_b, 2, axis=-1)                                    # (S, Dh)
    sin_sg = jnp.stack([-sin_b, sin_b], axis=-1).reshape(S, Dh)               # (S, Dh)
    cos_full = jnp.tile(cos_il, (1, NUM_HEADS))                               # (S, D)
    sin_full = jnp.tile(sin_sg, (1, NUM_HEADS))                               # (S, D)

    out = fused_decoder_layers(x, params["stacked"], cos_full, sin_full,
                               params["out_g"], params["out_b"], B=B, S=S)
    return out.reshape(B, S, D)


# ---------------- pure-JAX reference (for correctness check only) ----------------

def _reference_forward(tokens, params, rot_cos, rot_sin):
    B, S = tokens.shape
    D, NH, Dh = EMBED_DIM, NUM_HEADS, HEAD_DIM
    st = params["stacked"]
    cos_b, sin_b = rot_cos[:S], rot_sin[:S]

    def ln(v, g, b):
        m = jnp.mean(v, -1, keepdims=True)
        c = v - m
        var = jnp.mean(c * c, -1, keepdims=True)
        return c / jnp.sqrt(var + LN_EPS) * g + b

    def apply_rotary(t):  # (B, S, NH, Dh), interleaved pairs
        ts = t.reshape(*t.shape[:-1], -1, 2)
        tr, ti = ts[..., 0], ts[..., 1]
        c = cos_b[None, :, None, :]
        s = sin_b[None, :, None, :]
        return jnp.stack([tr * c - ti * s, tr * s + ti * c], axis=-1).reshape(t.shape)

    x = jnp.take(params["embedding"], tokens, axis=0)  # (B, S, D)
    mask = jnp.tril(jnp.ones((S, S), bool))
    for li in range(NUM_LAYERS):
        h = ln(x, st["ln1_g"][li, 0], st["ln1_b"][li, 0])
        qkv = h @ st["wqkv"][li] + st["bqkv"][li, 0]
        q, k, v = qkv[..., :D], qkv[..., D:2 * D], qkv[..., 2 * D:]
        q = apply_rotary(q.reshape(B, S, NH, Dh))
        k = apply_rotary(k.reshape(B, S, NH, Dh))
        v = v.reshape(B, S, NH, Dh)
        qh, kh, vh = (t.transpose(0, 2, 1, 3) for t in (q, k, v))
        s_ = jnp.einsum('bhqd,bhkd->bhqk', qh, kh) / math.sqrt(Dh)
        s_ = jnp.where(mask, s_, -1e30)
        p = jax.nn.softmax(s_, axis=-1)
        o = jnp.einsum('bhqk,bhkd->bhqd', p, vh).transpose(0, 2, 1, 3).reshape(B, S, D)
        x = x + o @ st["wo"][li] + st["bo"][li, 0]
        h2 = ln(x, st["ln2_g"][li, 0], st["ln2_b"][li, 0])
        f = jax.nn.gelu(h2 @ st["w1"][li] + st["b1"][li, 0], approximate=True)
        x = x + f @ st["w2"][li] + st["b2"][li, 0]
    return ln(x, params["out_g"], params["out_b"])


if __name__ == "__main__":
    key = jax.random.PRNGKey(0)
    k_tok, k_param = jax.random.split(key)

    B, S = 2, 8
    tokens = jax.random.randint(k_tok, (B, S), 0, VOCAB, dtype=jnp.int32)
    params = init_params(k_param)
    rot_cos, rot_sin = precompute_rotary(HEAD_DIM, MAX_SEQ, THETA)

    fwd = jax.jit(lambda t: decoder_forward(t, params, rot_cos, rot_sin))
    out = fwd(tokens)
    jax.block_until_ready(out)

    ref = _reference_forward(tokens, params, rot_cos, rot_sin)
    assert out.shape == (B, S, EMBED_DIM)
    assert bool(jnp.all(jnp.isfinite(out)))
    assert bool(jnp.allclose(out, ref, atol=1e-2, rtol=1e-2)), \
        f"max abs err {float(jnp.max(jnp.abs(out - ref)))}"
    print("KERNEL_OK")
</pallas_src>

<mosaic_0001>
module attributes {stable_mosaic.version = 11 : i64} {
  func.func @_decoder_kernel(%arg0: i32, %arg1: i32, %arg2: memref<8x32xf32, #tpu.memory_space<vmem>>, %arg3: memref<1x1x32xf32, #tpu.memory_space<vmem>>, %arg4: memref<1x1x32xf32, #tpu.memory_space<vmem>>, %arg5: memref<1x32x96xf32, #tpu.memory_space<vmem>>, %arg6: memref<1x1x96xf32, #tpu.memory_space<vmem>>, %arg7: memref<1x32x32xf32, #tpu.memory_space<vmem>>, %arg8: memref<1x1x32xf32, #tpu.memory_space<vmem>>, %arg9: memref<1x1x32xf32, #tpu.memory_space<vmem>>, %arg10: memref<1x1x32xf32, #tpu.memory_space<vmem>>, %arg11: memref<1x32x64xf32, #tpu.memory_space<vmem>>, %arg12: memref<1x1x64xf32, #tpu.memory_space<vmem>>, %arg13: memref<1x64x32xf32, #tpu.memory_space<vmem>>, %arg14: memref<1x1x32xf32, #tpu.memory_space<vmem>>, %arg15: memref<8x32xf32, #tpu.memory_space<vmem>>, %arg16: memref<8x32xf32, #tpu.memory_space<vmem>>, %arg17: memref<1x32xf32, #tpu.memory_space<vmem>>, %arg18: memref<1x32xf32, #tpu.memory_space<vmem>>, %arg19: memref<8x32xf32, #tpu.memory_space<vmem>>, %arg20: memref<8x32xf32, #tpu.memory_space<vmem>>) attributes {dimension_semantics = [#tpu.dimension_semantics<parallel>, #tpu.dimension_semantics<arbitrary>], iteration_bounds = array<i64: 2, 2>, scalar_prefetch = 0 : i64, scratch_operands = 1 : i64, tpu.core_type = #tpu.core_type<tc>, window_params = [{transform_indices = @transform_0, window_bounds = array<i64: 8, 32>}, {transform_indices = @transform_1, window_bounds = array<i64: 1, 1, 32>}, {transform_indices = @transform_2, window_bounds = array<i64: 1, 1, 32>}, {transform_indices = @transform_3, window_bounds = array<i64: 1, 32, 96>}, {transform_indices = @transform_4, window_bounds = array<i64: 1, 1, 96>}, {transform_indices = @transform_5, window_bounds = array<i64: 1, 32, 32>}, {transform_indices = @transform_6, window_bounds = array<i64: 1, 1, 32>}, {transform_indices = @transform_7, window_bounds = array<i64: 1, 1, 32>}, {transform_indices = @transform_8, window_bounds = array<i64: 1, 1, 32>}, {transform_indices = @transform_9, window_bounds = array<i64: 1, 32, 64>}, {transform_indices = @transform_10, window_bounds = array<i64: 1, 1, 64>}, {transform_indices = @transform_11, window_bounds = array<i64: 1, 64, 32>}, {transform_indices = @transform_12, window_bounds = array<i64: 1, 1, 32>}, {pipeline_mode = #tpu.pipeline_mode<synchronous>, transform_indices = @transform_13, window_bounds = array<i64: 8, 32>}, {pipeline_mode = #tpu.pipeline_mode<synchronous>, transform_indices = @transform_14, window_bounds = array<i64: 8, 32>}, {pipeline_mode = #tpu.pipeline_mode<synchronous>, transform_indices = @transform_15, window_bounds = array<i64: 1, 32>}, {pipeline_mode = #tpu.pipeline_mode<synchronous>, transform_indices = @transform_16, window_bounds = array<i64: 1, 32>}, {transform_indices = @transform_17, window_bounds = array<i64: 8, 32>}]} {
    %c0_i32 = arith.constant 0 : i32
    %0 = arith.cmpi eq, %arg1, %c0_i32 : i32
    %1 = arith.extui %0 : i1 to i32
    %c0_i32_0 = arith.constant 0 : i32
    %2 = arith.cmpi ne, %1, %c0_i32_0 : i32
    scf.if %2 {
      %c0_90 = arith.constant 0 : index
      %c0_91 = arith.constant 0 : index
      %211 = vector.load %arg2[%c0_90, %c0_91] : memref<8x32xf32, #tpu.memory_space<vmem>>, vector<8x32xf32>
      %c0_92 = arith.constant 0 : index
      %c0_93 = arith.constant 0 : index
      %212 = vector.load %arg20[%c0_92, %c0_93] : memref<8x32xf32, #tpu.memory_space<vmem>>, vector<8x32xf32>
      tpu.vector_store %arg20[%c0_92, %c0_93], %211 {strides = array<i32>} : memref<8x32xf32, #tpu.memory_space<vmem>>, vector<8x32xf32>,
    } else {
    }
    %c0 = arith.constant 0 : index
    %c0_1 = arith.constant 0 : index
    %3 = vector.load %arg20[%c0, %c0_1] : memref<8x32xf32, #tpu.memory_space<vmem>>, vector<8x32xf32>
    %c0_2 = arith.constant 0 : index
    %c0_3 = arith.constant 0 : index
    %c0_4 = arith.constant 0 : index
    %4 = vector.load %arg3[%c0_2, %c0_3, %c0_4] : memref<1x1x32xf32, #tpu.memory_space<vmem>>, vector<1x1x32xf32>
    %5 = vector.shape_cast %4 : vector<1x1x32xf32> to vector<1x32xf32>
    %c0_5 = arith.constant 0 : index
    %c0_6 = arith.constant 0 : index
    %c0_7 = arith.constant 0 : index
    %6 = vector.load %arg4[%c0_5, %c0_6, %c0_7] : memref<1x1x32xf32, #tpu.memory_space<vmem>>, vector<1x1x32xf32>
    %7 = vector.shape_cast %6 : vector<1x1x32xf32> to vector<1x32xf32>
    %cst = arith.constant dense<0.000000e+00> : vector<8xf32>
    %8 = vector.multi_reduction <add>, %3, %cst [1] : vector<8x32xf32> to vector<8xf32>
    %9 = vector.shape_cast %8 : vector<8xf32> to vector<8x1xf32>
    %cst_8 = arith.constant 3.200000e+01 : f32
    %10 = vector.broadcast %cst_8 : f32 to vector<8x1xf32>
    %11 = arith.divf %9, %10 : vector<8x1xf32>
    %12 = vector.broadcast %11 : vector<8x1xf32> to vector<8x32xf32>
    %13 = arith.subf %3, %12 : vector<8x32xf32>
    %14 = arith.mulf %13, %13 : vector<8x32xf32>
    %cst_9 = arith.constant dense<0.000000e+00> : vector<8xf32>
    %15 = vector.multi_reduction <add>, %14, %cst_9 [1] : vector<8x32xf32> to vector<8xf32>
    %16 = vector.shape_cast %15 : vector<8xf32> to vector<8x1xf32>
    %cst_10 = arith.constant 3.200000e+01 : f32
    %17 = vector.broadcast %cst_10 : f32 to vector<8x1xf32>
    %18 = arith.divf %16, %17 : vector<8x1xf32>
    %cst_11 = arith.constant 9.99999974E-6 : f32
    %19 = vector.broadcast %cst_11 : f32 to vector<8x1xf32>
    %20 = arith.addf %18, %19 : vector<8x1xf32>
    %21 = math.rsqrt %20 : vector<8x1xf32>
    %22 = vector.broadcast %21 : vector<8x1xf32> to vector<8x32xf32>
    %23 = arith.mulf %13, %22 : vector<8x32xf32>
    %24 = vector.broadcast %5 : vector<1x32xf32> to vector<8x32xf32>
    %25 = arith.mulf %23, %24 : vector<8x32xf32>
    %26 = vector.broadcast %7 : vector<1x32xf32> to vector<8x32xf32>
    %27 = arith.addf %25, %26 : vector<8x32xf32>
    %c0_12 = arith.constant 0 : index
    %c0_13 = arith.constant 0 : index
    %c0_14 = arith.constant 0 : index
    %28 = vector.load %arg5[%c0_12, %c0_13, %c0_14] : memref<1x32x96xf32, #tpu.memory_space<vmem>>, vector<1x32x96xf32>
    %29 = vector.shape_cast %28 : vector<1x32x96xf32> to vector<32x96xf32>
    %cst_15 = arith.constant dense<0.000000e+00> : vector<8x96xf32>
    %30 = tpu.matmul %27, %29, %cst_15 {dimension_numbers = #tpu.dot_dimension_numbers<[1], [0], [0], [1], [0, 0, 1, 1], [], []>} : vector<8x32xf32>, vector<32x96xf32>, vector<8x96xf32> -> vector<8x96xf32>
    %c0_16 = arith.constant 0 : index
    %c0_17 = arith.constant 0 : index
    %c0_18 = arith.constant 0 : index
    %31 = vector.load %arg6[%c0_16, %c0_17, %c0_18] : memref<1x1x96xf32, #tpu.memory_space<vmem>>, vector<1x1x96xf32>
    %32 = vector.shape_cast %31 : vector<1x1x96xf32> to vector<1x96xf32>
    %33 = vector.broadcast %32 : vector<1x96xf32> to vector<8x96xf32>
    %34 = arith.addf %30, %33 : vector<8x96xf32>
    %35 = vector.extract_strided_slice %34 {offsets = [0, 0], sizes = [8, 32], strides = [1, 1]} : vector<8x96xf32> to vector<8x32xf32>
    %36 = vector.extract_strided_slice %34 {offsets = [0, 32], sizes = [8, 32], strides = [1, 1]} : vector<8x96xf32> to vector<8x32xf32>
    %37 = vector.extract_strided_slice %34 {offsets = [0, 64], sizes = [8, 32], strides = [1, 1]} : vector<8x96xf32> to vector<8x32xf32>
    %38 = tpu.iota {dimensions = array<i32: 0>} : vector<32x32xi32>
    %39 = tpu.iota {dimensions = array<i32: 1>} : vector<32x32xi32>
    %c1_i32 = arith.constant 1 : i32
    %40 = vector.broadcast %c1_i32 : i32 to vector<32x32xi32>
    %41 = arith.addi %38, %40 : vector<32x32xi32>
    %c1_i32_19 = arith.constant 1 : i32
    %42 = vector.broadcast %c1_i32_19 : i32 to vector<32x32xi32>
    %43 = arith.andi %38, %42 : vector<32x32xi32>
    %c2_i32 = arith.constant 2 : i32
    %44 = vector.broadcast %c2_i32 : i32 to vector<32x32xi32>
    %45 = arith.muli %44, %43 : vector<32x32xi32>
    %46 = arith.subi %41, %45 : vector<32x32xi32>
    %47 = arith.cmpi eq, %39, %46 : vector<32x32xi32>
    %48 = arith.extui %47 : vector<32x32xi1> to vector<32x32xi32>
    %49 = arith.sitofp %48 : vector<32x32xi32> to vector<32x32xf32>
    %c0_20 = arith.constant 0 : index
    %c0_21 = arith.constant 0 : index
    %50 = vector.load %arg15[%c0_20, %c0_21] : memref<8x32xf32, #tpu.memory_space<vmem>>, vector<8x32xf32>
    %c0_22 = arith.constant 0 : index
    %c0_23 = arith.constant 0 : index
    %51 = vector.load %arg16[%c0_22, %c0_23] : memref<8x32xf32, #tpu.memory_space<vmem>>, vector<8x32xf32>
    %cst_24 = arith.constant dense<0.000000e+00> : vector<8x32xf32>
    %52 = tpu.matmul %35, %49, %cst_24 {dimension_numbers = #tpu.dot_dimension_numbers<[1], [0], [0], [1], [0, 0, 1, 1], [], []>} : vector<8x32xf32>, vector<32x32xf32>, vector<8x32xf32> -> vector<8x32xf32>
    %53 = arith.mulf %35, %50 : vector<8x32xf32>
    %54 = arith.mulf %52, %51 : vector<8x32xf32>
    %55 = arith.addf %53, %54 : vector<8x32xf32>
    %cst_25 = arith.constant 0.353553385 : f32
    %56 = vector.broadcast %cst_25 : f32 to vector<8x32xf32>
    %57 = arith.mulf %55, %56 : vector<8x32xf32>
    %cst_26 = arith.constant dense<0.000000e+00> : vector<8x32xf32>
    %58 = tpu.matmul %36, %49, %cst_26 {dimension_numbers = #tpu.dot_dimension_numbers<[1], [0], [0], [1], [0, 0, 1, 1], [], []>} : vector<8x32xf32>, vector<32x32xf32>, vector<8x32xf32> -> vector<8x32xf32>
    %59 = arith.mulf %36, %50 : vector<8x32xf32>
    %60 = arith.mulf %58, %51 : vector<8x32xf32>
    %61 = arith.addf %59, %60 : vector<8x32xf32>
    %62 = tpu.iota {dimensions = array<i32: 0>} : vector<8x8xi32>
    %63 = tpu.iota {dimensions = array<i32: 1>} : vector<8x8xi32>
    %64 = arith.cmpi sle, %63, %62 : vector<8x8xi32>
    %c0_27 = arith.constant 0 : index
    %c0_28 = arith.constant 0 : index
    %c0_29 = arith.constant 0 : index
    %65 = vector.load %arg7[%c0_27, %c0_28, %c0_29] : memref<1x32x32xf32, #tpu.memory_space<vmem>>, vector<1x32x32xf32>
    %66 = vector.shape_cast %65 : vector<1x32x32xf32> to vector<32x32xf32>
    %67 = vector.extract_strided_slice %57 {offsets = [0, 0], sizes = [8, 8], strides = [1, 1]} : vector<8x32xf32> to vector<8x8xf32>
    %68 = vector.extract_strided_slice %61 {offsets = [0, 0], sizes = [8, 8], strides = [1, 1]} : vector<8x32xf32> to vector<8x8xf32>
    %69 = vector.extract_strided_slice %37 {offsets = [0, 0], sizes = [8, 8], strides = [1, 1]} : vector<8x32xf32> to vector<8x8xf32>
    %70 = tpu.transpose %68, [1, 0] : vector<8x8xf32> -> vector<8x8xf32>
    %cst_30 = arith.constant dense<0.000000e+00> : vector<8x8xf32>
    %71 = tpu.matmul %67, %70, %cst_30 {dimension_numbers = #tpu.dot_dimension_numbers<[1], [0], [0], [1], [0, 0, 1, 1], [], []>} : vector<8x8xf32>, vector<8x8xf32>, vector<8x8xf32> -> vector<8x8xf32>
    %cst_31 = arith.constant -1.000000e+30 : f32
    %72 = vector.broadcast %cst_31 : f32 to vector<8x8xf32>
    %73 = arith.select %64, %71, %72 : vector<8x8xi1>, vector<8x8xf32>
    %cst_32 = arith.constant dense<0xFF800000> : vector<8xf32>
    %74 = vector.multi_reduction <maximumf>, %73, %cst_32 [1] : vector<8x8xf32> to vector<8xf32>
    %75 = vector.shape_cast %74 : vector<8xf32> to vector<8x1xf32>
    %76 = vector.broadcast %75 : vector<8x1xf32> to vector<8x8xf32>
    %77 = arith.subf %73, %76 : vector<8x8xf32>
    %78 = math.exp %77 : vector<8x8xf32>
    %cst_33 = arith.constant dense<0.000000e+00> : vector<8xf32>
    %79 = vector.multi_reduction <add>, %78, %cst_33 [1] : vector<8x8xf32> to vector<8xf32>
    %80 = vector.shape_cast %79 : vector<8xf32> to vector<8x1xf32>
    %cst_34 = arith.constant dense<0.000000e+00> : vector<8x8xf32>
    %81 = tpu.matmul %78, %69, %cst_34 {dimension_numbers = #tpu.dot_dimension_numbers<[1], [0], [0], [1], [0, 0, 1, 1], [], []>} : vector<8x8xf32>, vector<8x8xf32>, vector<8x8xf32> -> vector<8x8xf32>
    %82 = tpu.reciprocal %80 {approx = true} : vector<8x1xf32> -> vector<8x1xf32>
    %83 = vector.broadcast %82 : vector<8x1xf32> to vector<8x8xf32>
    %84 = arith.mulf %81, %83 : vector<8x8xf32>
    %85 = vector.extract_strided_slice %66 {offsets = [0, 0], sizes = [8, 32], strides = [1, 1]} : vector<32x32xf32> to vector<8x32xf32>
    %cst_35 = arith.constant dense<0.000000e+00> : vector<8x32xf32>
    %86 = tpu.matmul %84, %85, %cst_35 {dimension_numbers = #tpu.dot_dimension_numbers<[1], [0], [0], [1], [0, 0, 1, 1], [], []>} : vector<8x8xf32>, vector<8x32xf32>, vector<8x32xf32> -> vector<8x32xf32>
    %87 = vector.extract_strided_slice %57 {offsets = [0, 8], sizes = [8, 8], strides = [1, 1]} : vector<8x32xf32> to vector<8x8xf32>
    %88 = vector.extract_strided_slice %61 {offsets = [0, 8], sizes = [8, 8], strides = [1, 1]} : vector<8x32xf32> to vector<8x8xf32>
    %89 = vector.extract_strided_slice %37 {offsets = [0, 8], sizes = [8, 8], strides = [1, 1]} : vector<8x32xf32> to vector<8x8xf32>
    %90 = tpu.transpose %88, [1, 0] : vector<8x8xf32> -> vector<8x8xf32>
    %cst_36 = arith.constant dense<0.000000e+00> : vector<8x8xf32>
    %91 = tpu.matmul %87, %90, %cst_36 {dimension_numbers = #tpu.dot_dimension_numbers<[1], [0], [0], [1], [0, 0, 1, 1], [], []>} : vector<8x8xf32>, vector<8x8xf32>, vector<8x8xf32> -> vector<8x8xf32>
    %cst_37 = arith.constant -1.000000e+30 : f32
    %92 = vector.broadcast %cst_37 : f32 to vector<8x8xf32>
    %93 = arith.select %64, %91, %92 : vector<8x8xi1>, vector<8x8xf32>
    %cst_38 = arith.constant dense<0xFF800000> : vector<8xf32>
    %94 = vector.multi_reduction <maximumf>, %93, %cst_38 [1] : vector<8x8xf32> to vector<8xf32>
    %95 = vector.shape_cast %94 : vector<8xf32> to vector<8x1xf32>
    %96 = vector.broadcast %95 : vector<8x1xf32> to vector<8x8xf32>
    %97 = arith.subf %93, %96 : vector<8x8xf32>
    %98 = math.exp %97 : vector<8x8xf32>
    %cst_39 = arith.constant dense<0.000000e+00> : vector<8xf32>
    %99 = vector.multi_reduction <add>, %98, %cst_39 [1] : vector<8x8xf32> to vector<8xf32>
    %100 = vector.shape_cast %99 : vector<8xf32> to vector<8x1xf32>
    %cst_40 = arith.constant dense<0.000000e+00> : vector<8x8xf32>
    %101 = tpu.matmul %98, %89, %cst_40 {dimension_numbers = #tpu.dot_dimension_numbers<[1], [0], [0], [1], [0, 0, 1, 1], [], []>} : vector<8x8xf32>, vector<8x8xf32>, vector<8x8xf32> -> vector<8x8xf32>
    %102 = tpu.reciprocal %100 {approx = true} : vector<8x1xf32> -> vector<8x1xf32>
    %103 = vector.broadcast %102 : vector<8x1xf32> to vector<8x8xf32>
    %104 = arith.mulf %101, %103 : vector<8x8xf32>
    %105 = vector.extract_strided_slice %66 {offsets = [8, 0], sizes = [8, 32], strides = [1, 1]} : vector<32x32xf32> to vector<8x32xf32>
    %cst_41 = arith.constant dense<0.000000e+00> : vector<8x32xf32>
    %106 = tpu.matmul %104, %105, %cst_41 {dimension_numbers = #tpu.dot_dimension_numbers<[1], [0], [0], [1], [0, 0, 1, 1], [], []>} : vector<8x8xf32>, vector<8x32xf32>, vector<8x32xf32> -> vector<8x32xf32>
    %107 = arith.addf %86, %106 : vector<8x32xf32>
    %108 = vector.extract_strided_slice %57 {offsets = [0, 16], sizes = [8, 8], strides = [1, 1]} : vector<8x32xf32> to vector<8x8xf32>
    %109 = vector.extract_strided_slice %61 {offsets = [0, 16], sizes = [8, 8], strides = [1, 1]} : vector<8x32xf32> to vector<8x8xf32>
    %110 = vector.extract_strided_slice %37 {offsets = [0, 16], sizes = [8, 8], strides = [1, 1]} : vector<8x32xf32> to vector<8x8xf32>
    %111 = tpu.transpose %109, [1, 0] : vector<8x8xf32> -> vector<8x8xf32>
    %cst_42 = arith.constant dense<0.000000e+00> : vector<8x8xf32>
    %112 = tpu.matmul %108, %111, %cst_42 {dimension_numbers = #tpu.dot_dimension_numbers<[1], [0], [0], [1], [0, 0, 1, 1], [], []>} : vector<8x8xf32>, vector<8x8xf32>, vector<8x8xf32> -> vector<8x8xf32>
    %cst_43 = arith.constant -1.000000e+30 : f32
    %113 = vector.broadcast %cst_43 : f32 to vector<8x8xf32>
    %114 = arith.select %64, %112, %113 : vector<8x8xi1>, vector<8x8xf32>
    %cst_44 = arith.constant dense<0xFF800000> : vector<8xf32>
    %115 = vector.multi_reduction <maximumf>, %114, %cst_44 [1] : vector<8x8xf32> to vector<8xf32>
    %116 = vector.shape_cast %115 : vector<8xf32> to vector<8x1xf32>
    %117 = vector.broadcast %116 : vector<8x1xf32> to vector<8x8xf32>
    %118 = arith.subf %114, %117 : vector<8x8xf32>
    %119 = math.exp %118 : vector<8x8xf32>
    %cst_45 = arith.constant dense<0.000000e+00> : vector<8xf32>
    %120 = vector.multi_reduction <add>, %119, %cst_45 [1] : vector<8x8xf32> to vector<8xf32>
    %121 = vector.shape_cast %120 : vector<8xf32> to vector<8x1xf32>
    %cst_46 = arith.constant dense<0.000000e+00> : vector<8x8xf32>
    %122 = tpu.matmul %119, %110, %cst_46 {dimension_numbers = #tpu.dot_dimension_numbers<[1], [0], [0], [1], [0, 0, 1, 1], [], []>} : vector<8x8xf32>, vector<8x8xf32>, vector<8x8xf32> -> vector<8x8xf32>
    %123 = tpu.reciprocal %121 {approx = true} : vector<8x1xf32> -> vector<8x1xf32>
    %124 = vector.broadcast %123 : vector<8x1xf32> to vector<8x8xf32>
    %125 = arith.mulf %122, %124 : vector<8x8xf32>
    %126 = vector.extract_strided_slice %66 {offsets = [16, 0], sizes = [8, 32], strides = [1, 1]} : vector<32x32xf32> to vector<8x32xf32>
    %cst_47 = arith.constant dense<0.000000e+00> : vector<8x32xf32>
    %127 = tpu.matmul %125, %126, %cst_47 {dimension_numbers = #tpu.dot_dimension_numbers<[1], [0], [0], [1], [0, 0, 1, 1], [], []>} : vector<8x8xf32>, vector<8x32xf32>, vector<8x32xf32> -> vector<8x32xf32>
    %128 = arith.addf %107, %127 : vector<8x32xf32>
    %129 = vector.extract_strided_slice %57 {offsets = [0, 24], sizes = [8, 8], strides = [1, 1]} : vector<8x32xf32> to vector<8x8xf32>
    %130 = vector.extract_strided_slice %61 {offsets = [0, 24], sizes = [8, 8], strides = [1, 1]} : vector<8x32xf32> to vector<8x8xf32>
    %131 = vector.extract_strided_slice %37 {offsets = [0, 24], sizes = [8, 8], strides = [1, 1]} : vector<8x32xf32> to vector<8x8xf32>
    %132 = tpu.transpose %130, [1, 0] : vector<8x8xf32> -> vector<8x8xf32>
    %cst_48 = arith.constant dense<0.000000e+00> : vector<8x8xf32>
    %133 = tpu.matmul %129, %132, %cst_48 {dimension_numbers = #tpu.dot_dimension_numbers<[1], [0], [0], [1], [0, 0, 1, 1], [], []>} : vector<8x8xf32>, vector<8x8xf32>, vector<8x8xf32> -> vector<8x8xf32>
    %cst_49 = arith.constant -1.000000e+30 : f32
    %134 = vector.broadcast %cst_49 : f32 to vector<8x8xf32>
    %135 = arith.select %64, %133, %134 : vector<8x8xi1>, vector<8x8xf32>
    %cst_50 = arith.constant dense<0xFF800000> : vector<8xf32>
    %136 = vector.multi_reduction <maximumf>, %135, %cst_50 [1] : vector<8x8xf32> to vector<8xf32>
    %137 = vector.shape_cast %136 : vector<8xf32> to vector<8x1xf32>
    %138 = vector.broadcast %137 : vector<8x1xf32> to vector<8x8xf32>
    %139 = arith.subf %135, %138 : vector<8x8xf32>
    %140 = math.exp %139 : vector<8x8xf32>
    %cst_51 = arith.constant dense<0.000000e+00> : vector<8xf32>
    %141 = vector.multi_reduction <add>, %140, %cst_51 [1] : vector<8x8xf32> to vector<8xf32>
    %142 = vector.shape_cast %141 : vector<8xf32> to vector<8x1xf32>
    %cst_52 = arith.constant dense<0.000000e+00> : vector<8x8xf32>
    %143 = tpu.matmul %140, %131, %cst_52 {dimension_numbers = #tpu.dot_dimension_numbers<[1], [0], [0], [1], [0, 0, 1, 1], [], []>} : vector<8x8xf32>, vector<8x8xf32>, vector<8x8xf32> -> vector<8x8xf32>
    %144 = tpu.reciprocal %142 {approx = true} : vector<8x1xf32> -> vector<8x1xf32>
    %145 = vector.broadcast %144 : vector<8x1xf32> to vector<8x8xf32>
    %146 = arith.mulf %143, %145 : vector<8x8xf32>
    %147 = vector.extract_strided_slice %66 {offsets = [24, 0], sizes = [8, 32], strides = [1, 1]} : vector<32x32xf32> to vector<8x32xf32>
    %cst_53 = arith.constant dense<0.000000e+00> : vector<8x32xf32>
    %148 = tpu.matmul %146, %147, %cst_53 {dimension_numbers = #tpu.dot_dimension_numbers<[1], [0], [0], [1], [0, 0, 1, 1], [], []>} : vector<8x8xf32>, vector<8x32xf32>, vector<8x32xf32> -> vector<8x32xf32>
    %149 = arith.addf %128, %148 : vector<8x32xf32>
    %c0_54 = arith.constant 0 : index
    %c0_55 = arith.constant 0 : index
    %c0_56 = arith.constant 0 : index
    %150 = vector.load %arg8[%c0_54, %c0_55, %c0_56] : memref<1x1x32xf32, #tpu.memory_space<vmem>>, vector<1x1x32xf32>
    %151 = vector.shape_cast %150 : vector<1x1x32xf32> to vector<1x32xf32>
    %152 = vector.broadcast %151 : vector<1x32xf32> to vector<8x32xf32>
    %153 = arith.addf %149, %152 : vector<8x32xf32>
    %154 = arith.addf %3, %153 : vector<8x32xf32>
    %c0_57 = arith.constant 0 : index
    %c0_58 = arith.constant 0 : index
    %c0_59 = arith.constant 0 : index
    %155 = vector.load %arg9[%c0_57, %c0_58, %c0_59] : memref<1x1x32xf32, #tpu.memory_space<vmem>>, vector<1x1x32xf32>
    %156 = vector.shape_cast %155 : vector<1x1x32xf32> to vector<1x32xf32>
    %c0_60 = arith.constant 0 : index
    %c0_61 = arith.constant 0 : index
    %c0_62 = arith.constant 0 : index
    %157 = vector.load %arg10[%c0_60, %c0_61, %c0_62] : memref<1x1x32xf32, #tpu.memory_space<vmem>>, vector<1x1x32xf32>
    %158 = vector.shape_cast %157 : vector<1x1x32xf32> to vector<1x32xf32>
    %cst_63 = arith.constant dense<0.000000e+00> : vector<8xf32>
    %159 = vector.multi_reduction <add>, %154, %cst_63 [1] : vector<8x32xf32> to vector<8xf32>
    %160 = vector.shape_cast %159 : vector<8xf32> to vector<8x1xf32>
    %cst_64 = arith.constant 3.200000e+01 : f32
    %161 = vector.broadcast %cst_64 : f32 to vector<8x1xf32>
    %162 = arith.divf %160, %161 : vector<8x1xf32>
    %163 = vector.broadcast %162 : vector<8x1xf32> to vector<8x32xf32>
    %164 = arith.subf %154, %163 : vector<8x32xf32>
    %165 = arith.mulf %164, %164 : vector<8x32xf32>
    %cst_65 = arith.constant dense<0.000000e+00> : vector<8xf32>
    %166 = vector.multi_reduction <add>, %165, %cst_65 [1] : vector<8x32xf32> to vector<8xf32>
    %167 = vector.shape_cast %166 : vector<8xf32> to vector<8x1xf32>
    %cst_66 = arith.constant 3.200000e+01 : f32
    %168 = vector.broadcast %cst_66 : f32 to vector<8x1xf32>
    %169 = arith.divf %167, %168 : vector<8x1xf32>
    %cst_67 = arith.constant 9.99999974E-6 : f32
    %170 = vector.broadcast %cst_67 : f32 to vector<8x1xf32>
    %171 = arith.addf %169, %170 : vector<8x1xf32>
    %172 = math.rsqrt %171 : vector<8x1xf32>
    %173 = vector.broadcast %172 : vector<8x1xf32> to vector<8x32xf32>
    %174 = arith.mulf %164, %173 : vector<8x32xf32>
    %175 = vector.broadcast %156 : vector<1x32xf32> to vector<8x32xf32>
    %176 = arith.mulf %174, %175 : vector<8x32xf32>
    %177 = vector.broadcast %158 : vector<1x32xf32> to vector<8x32xf32>
    %178 = arith.addf %176, %177 : vector<8x32xf32>
    %c0_68 = arith.constant 0 : index
    %c0_69 = arith.constant 0 : index
    %c0_70 = arith.constant 0 : index
    %179 = vector.load %arg11[%c0_68, %c0_69, %c0_70] : memref<1x32x64xf32, #tpu.memory_space<vmem>>, vector<1x32x64xf32>
    %180 = vector.shape_cast %179 : vector<1x32x64xf32> to vector<32x64xf32>
    %cst_71 = arith.constant dense<0.000000e+00> : vector<8x64xf32>
    %181 = tpu.matmul %178, %180, %cst_71 {dimension_numbers = #tpu.dot_dimension_numbers<[1], [0], [0], [1], [0, 0, 1, 1], [], []>} : vector<8x32xf32>, vector<32x64xf32>, vector<8x64xf32> -> vector<8x64xf32>
    %c0_72 = arith.constant 0 : index
    %c0_73 = arith.constant 0 : index
    %c0_74 = arith.constant 0 : index
    %182 = vector.load %arg12[%c0_72, %c0_73, %c0_74] : memref<1x1x64xf32, #tpu.memory_space<vmem>>, vector<1x1x64xf32>
    %183 = vector.shape_cast %182 : vector<1x1x64xf32> to vector<1x64xf32>
    %184 = vector.broadcast %183 : vector<1x64xf32> to vector<8x64xf32>
    %185 = arith.addf %181, %184 : vector<8x64xf32>
    %186 = arith.mulf %185, %185 : vector<8x64xf32>
    %187 = arith.mulf %185, %186 : vector<8x64xf32>
    %cst_75 = arith.constant 4.471500e-02 : f32
    %188 = vector.broadcast %cst_75 : f32 to vector<8x64xf32>
    %189 = arith.mulf %188, %187 : vector<8x64xf32>
    %190 = arith.addf %185, %189 : vector<8x64xf32>
    %cst_76 = arith.constant 0.797884583 : f32
    %191 = vector.broadcast %cst_76 : f32 to vector<8x64xf32>
    %192 = arith.mulf %191, %190 : vector<8x64xf32>
    %193 = math.tanh %192 : vector<8x64xf32>
    %cst_77 = arith.constant 1.000000e+00 : f32
    %194 = vector.broadcast %cst_77 : f32 to vector<8x64xf32>
    %195 = arith.addf %194, %193 : vector<8x64xf32>
    %cst_78 = arith.constant 5.000000e-01 : f32
    %196 = vector.broadcast %cst_78 : f32 to vector<8x64xf32>
    %197 = arith.mulf %196, %195 : vector<8x64xf32>
    %198 = arith.mulf %185, %197 : vector<8x64xf32>
    %c0_79 = arith.constant 0 : index
    %c0_80 = arith.constant 0 : index
    %c0_81 = arith.constant 0 : index
    %199 = vector.load %arg13[%c0_79, %c0_80, %c0_81] : memref<1x64x32xf32, #tpu.memory_space<vmem>>, vector<1x64x32xf32>
    %200 = vector.shape_cast %199 : vector<1x64x32xf32> to vector<64x32xf32>
    %cst_82 = arith.constant dense<0.000000e+00> : vector<8x32xf32>
    %201 = tpu.matmul %198, %200, %cst_82 {dimension_numbers = #tpu.dot_dimension_numbers<[1], [0], [0], [1], [0, 0, 1, 1], [], []>} : vector<8x64xf32>, vector<64x32xf32>, vector<8x32xf32> -> vector<8x32xf32>
    %c0_83 = arith.constant 0 : index
    %c0_84 = arith.constant 0 : index
    %c0_85 = arith.constant 0 : index
    %202 = vector.load %arg14[%c0_83, %c0_84, %c0_85] : memref<1x1x32xf32, #tpu.memory_space<vmem>>, vector<1x1x32xf32>
    %203 = vector.shape_cast %202 : vector<1x1x32xf32> to vector<1x32xf32>
    %204 = vector.broadcast %203 : vector<1x32xf32> to vector<8x32xf32>
    %205 = arith.addf %201, %204 : vector<8x32xf32>
    %206 = arith.addf %154, %205 : vector<8x32xf32>
    %c0_86 = arith.constant 0 : index
    %c0_87 = arith.constant 0 : index
    %207 = vector.load %arg20[%c0_86, %c0_87] : memref<8x32xf32, #tpu.memory_space<vmem>>, vector<8x32xf32>
    tpu.vector_store %arg20[%c0_86, %c0_87], %206 {strides = array<i32>} : memref<8x32xf32, #tpu.memory_space<vmem>>, vector<8x32xf32>,
    %c1_i32_88 = arith.constant 1 : i32
    %208 = arith.cmpi eq, %arg1, %c1_i32_88 : i32
    %209 = arith.extui %208 : i1 to i32
    %c0_i32_89 = arith.constant 0 : i32
    %210 = arith.cmpi ne, %209, %c0_i32_89 : i32
    scf.if %210 {
      %c0_90 = arith.constant 0 : index
      %c0_91 = arith.constant 0 : index
      %211 = vector.load %arg17[%c0_90, %c0_91] : memref<1x32xf32, #tpu.memory_space<vmem>>, vector<1x32xf32>
      %c0_92 = arith.constant 0 : index
      %c0_93 = arith.constant 0 : index
      %212 = vector.load %arg18[%c0_92, %c0_93] : memref<1x32xf32, #tpu.memory_space<vmem>>, vector<1x32xf32>
      %cst_94 = arith.constant dense<0.000000e+00> : vector<8xf32>
      %213 = vector.multi_reduction <add>, %206, %cst_94 [1] : vector<8x32xf32> to vector<8xf32>
      %214 = vector.shape_cast %213 : vector<8xf32> to vector<8x1xf32>
      %cst_95 = arith.constant 3.200000e+01 : f32
      %215 = vector.broadcast %cst_95 : f32 to vector<8x1xf32>
      %216 = arith.divf %214, %215 : vector<8x1xf32>
      %217 = vector.broadcast %216 : vector<8x1xf32> to vector<8x32xf32>
      %218 = arith.subf %206, %217 : vector<8x32xf32>
      %219 = arith.mulf %218, %218 : vector<8x32xf32>
      %cst_96 = arith.constant dense<0.000000e+00> : vector<8xf32>
      %220 = vector.multi_reduction <add>, %219, %cst_96 [1] : vector<8x32xf32> to vector<8xf32>
      %221 = vector.shape_cast %220 : vector<8xf32> to vector<8x1xf32>
      %cst_97 = arith.constant 3.200000e+01 : f32
      %222 = vector.broadcast %cst_97 : f32 to vector<8x1xf32>
      %223 = arith.divf %221, %222 : vector<8x1xf32>
      %cst_98 = arith.constant 9.99999974E-6 : f32
      %224 = vector.broadcast %cst_98 : f32 to vector<8x1xf32>
      %225 = arith.addf %223, %224 : vector<8x1xf32>
      %226 = math.rsqrt %225 : vector<8x1xf32>
      %227 = vector.broadcast %226 : vector<8x1xf32> to vector<8x32xf32>
      %228 = arith.mulf %218, %227 : vector<8x32xf32>
      %229 = vector.broadcast %211 : vector<1x32xf32> to vector<8x32xf32>
      %230 = arith.mulf %228, %229 : vector<8x32xf32>
      %231 = vector.broadcast %212 : vector<1x32xf32> to vector<8x32xf32>
      %232 = arith.addf %230, %231 : vector<8x32xf32>
      %c0_99 = arith.constant 0 : index
      %c0_100 = arith.constant 0 : index
      %233 = vector.load %arg19[%c0_99, %c0_100] : memref<8x32xf32, #tpu.memory_space<vmem>>, vector<8x32xf32>
      tpu.vector_store %arg19[%c0_99, %c0_100], %232 {strides = array<i32>} : memref<8x32xf32, #tpu.memory_space<vmem>>, vector<8x32xf32>,
    } else {
    }
    return
  }
  func.func @transform_0(%arg0: i32, %arg1: i32) -> (i32, i32) {
    %c0_i32 = arith.constant 0 : i32
    %c0_i32_0 = arith.constant 0 : i32
    return %arg0, %c0_i32 : i32, i32
  }
  func.func @transform_1(%arg0: i32, %arg1: i32) -> (i32, i32, i32) {
    %c0_i32 = arith.constant 0 : i32
    %c0_i32_0 = arith.constant 0 : i32
    %c0_i32_1 = arith.constant 0 : i32
    return %arg1, %c0_i32, %c0_i32_0 : i32, i32, i32
  }
  func.func @transform_2(%arg0: i32, %arg1: i32) -> (i32, i32, i32) {
    %c0_i32 = arith.constant 0 : i32
    %c0_i32_0 = arith.constant 0 : i32
    %c0_i32_1 = arith.constant 0 : i32
    return %arg1, %c0_i32, %c0_i32_0 : i32, i32, i32
  }
  func.func @transform_3(%arg0: i32, %arg1: i32) -> (i32, i32, i32) {
    %c0_i32 = arith.constant 0 : i32
    %c0_i32_0 = arith.constant 0 : i32
    %c0_i32_1 = arith.constant 0 : i32
    return %arg1, %c0_i32, %c0_i32_0 : i32, i32, i32
  }
  func.func @transform_4(%arg0: i32, %arg1: i32) -> (i32, i32, i32) {
    %c0_i32 = arith.constant 0 : i32
    %c0_i32_0 = arith.constant 0 : i32
    %c0_i32_1 = arith.constant 0 : i32
    return %arg1, %c0_i32, %c0_i32_0 : i32, i32, i32
  }
  func.func @transform_5(%arg0: i32, %arg1: i32) -> (i32, i32, i32) {
    %c0_i32 = arith.constant 0 : i32
    %c0_i32_0 = arith.constant 0 : i32
    %c0_i32_1 = arith.constant 0 : i32
    return %arg1, %c0_i32, %c0_i32_0 : i32, i32, i32
  }
  func.func @transform_6(%arg0: i32, %arg1: i32) -> (i32, i32, i32) {
    %c0_i32 = arith.constant 0 : i32
    %c0_i32_0 = arith.constant 0 : i32
    %c0_i32_1 = arith.constant 0 : i32
    return %arg1, %c0_i32, %c0_i32_0 : i32, i32, i32
  }
  func.func @transform_7(%arg0: i32, %arg1: i32) -> (i32, i32, i32) {
    %c0_i32 = arith.constant 0 : i32
    %c0_i32_0 = arith.constant 0 : i32
    %c0_i32_1 = arith.constant 0 : i32
    return %arg1, %c0_i32, %c0_i32_0 : i32, i32, i32
  }
  func.func @transform_8(%arg0: i32, %arg1: i32) -> (i32, i32, i32) {
    %c0_i32 = arith.constant 0 : i32
    %c0_i32_0 = arith.constant 0 : i32
    %c0_i32_1 = arith.constant 0 : i32
    return %arg1, %c0_i32, %c0_i32_0 : i32, i32, i32
  }
  func.func @transform_9(%arg0: i32, %arg1: i32) -> (i32, i32, i32) {
    %c0_i32 = arith.constant 0 : i32
    %c0_i32_0 = arith.constant 0 : i32
    %c0_i32_1 = arith.constant 0 : i32
    return %arg1, %c0_i32, %c0_i32_0 : i32, i32, i32
  }
  func.func @transform_10(%arg0: i32, %arg1: i32) -> (i32, i32, i32) {
    %c0_i32 = arith.constant 0 : i32
    %c0_i32_0 = arith.constant 0 : i32
    %c0_i32_1 = arith.constant 0 : i32
    return %arg1, %c0_i32, %c0_i32_0 : i32, i32, i32
  }
  func.func @transform_11(%arg0: i32, %arg1: i32) -> (i32, i32, i32) {
    %c0_i32 = arith.constant 0 : i32
    %c0_i32_0 = arith.constant 0 : i32
    %c0_i32_1 = arith.constant 0 : i32
    return %arg1, %c0_i32, %c0_i32_0 : i32, i32, i32
  }
  func.func @transform_12(%arg0: i32, %arg1: i32) -> (i32, i32, i32) {
    %c0_i32 = arith.constant 0 : i32
    %c0_i32_0 = arith.constant 0 : i32
    %c0_i32_1 = arith.constant 0 : i32
    return %arg1, %c0_i32, %c0_i32_0 : i32, i32, i32
  }
  func.func @transform_13(%arg0: i32, %arg1: i32) -> (i32, i32) {
    %c0_i32 = arith.constant 0 : i32
    %c0_i32_0 = arith.constant 0 : i32
    %c0_i32_1 = arith.constant 0 : i32
    return %c0_i32, %c0_i32_0 : i32, i32
  }
  func.func @transform_14(%arg0: i32, %arg1: i32) -> (i32, i32) {
    %c0_i32 = arith.constant 0 : i32
    %c0_i32_0 = arith.constant 0 : i32
    %c0_i32_1 = arith.constant 0 : i32
    return %c0_i32, %c0_i32_0 : i32, i32
  }
  func.func @transform_15(%arg0: i32, %arg1: i32) -> (i32, i32) {
    %c0_i32 = arith.constant 0 : i32
    %c0_i32_0 = arith.constant 0 : i32
    %c0_i32_1 = arith.constant 0 : i32
    return %c0_i32, %c0_i32_0 : i32, i32
  }
  func.func @transform_16(%arg0: i32, %arg1: i32) -> (i32, i32) {
    %c0_i32 = arith.constant 0 : i32
    %c0_i32_0 = arith.constant 0 : i32
    %c0_i32_1 = arith.constant 0 : i32
    return %c0_i32, %c0_i32_0 : i32, i32
  }
  func.func @transform_17(%arg0: i32, %arg1: i32) -> (i32, i32) {
    %c0_i32 = arith.constant 0 : i32
    %c0_i32_0 = arith.constant 0 : i32
    return %arg0, %c0_i32 : i32, i32
  }
}

</mosaic_0001>

<llo_original>
// kernel: tile.11
$region0: #{tile.11}
  %s0 = inlined_call_operand.vmem [shape: f32[8,4,8], index: 0, kind: input, shape index: {}]
  %s1 = inlined_call_operand.vmem [shape: f32[8,32], index: 1, kind: output, shape index: {}]
  $region1: #{tile.11} parent=0
    #allocation0 [shape = 'u8[32768]{0}', space=vmem, size = 0x8000, scoped, tag = 'scoped mem for input reshape']
    %s3 = sshllo.u32 0, 4
    %s4 = smul.addr 4, 7
    %s5 = scalar_lea.vmem %s0, %s4
    %v6 = vld [vmem:[%s5] sm:%s3]
    %s7 = scalar_lea.vmem [#allocation0], 56
    %8 = vst [vmem:[%s7] sm:%s3] %v6
    %s9 = smul.addr 4, 6
    %s10 = scalar_lea.vmem %s0, %s9
    %v11 = vld [vmem:[%s10] sm:%s3]
    %s12 = scalar_lea.vmem [#allocation0], 48
    %13 = vst [vmem:[%s12] sm:%s3] %v11
    %s14 = smul.addr 4, 5
    %s15 = scalar_lea.vmem %s0, %s14
    %v16 = vld [vmem:[%s15] sm:%s3]
    %s17 = scalar_lea.vmem [#allocation0], 40
    %18 = vst [vmem:[%s17] sm:%s3] %v16
    %s19 = smul.addr 4, 4
    %s20 = scalar_lea.vmem %s0, %s19
    %v21 = vld [vmem:[%s20] sm:%s3]
    %s22 = scalar_lea.vmem [#allocation0], 32
    %23 = vst [vmem:[%s22] sm:%s3] %v21
    %s24 = smul.addr 4, 3
    %s25 = scalar_lea.vmem %s0, %s24
    %v26 = vld [vmem:[%s25] sm:%s3]
    %s27 = scalar_lea.vmem [#allocation0], 24
    %28 = vst [vmem:[%s27] sm:%s3] %v26
    %s29 = smul.addr 4, 2
    %s30 = scalar_lea.vmem %s0, %s29
    %v31 = vld [vmem:[%s30] sm:%s3]
    %s32 = scalar_lea.vmem [#allocation0], 16
    %33 = vst [vmem:[%s32] sm:%s3] %v31
    %s34 = scalar_lea.vmem %s0, 4
    %v35 = vld [vmem:[%s34] sm:%s3]
    %s36 = scalar_lea.vmem [#allocation0], 8
    %37 = vst [vmem:[%s36] sm:%s3] %v35
    %v38 = vld [vmem:[%s0] sm:%s3]
    %39 = vst [vmem:[#allocation0] sm:%s3] %v38
    %v40 = vld [vmem:[#allocation0] ss:$8 sm:$0xf]
    %v41 = vld [vmem:[#allocation0] ss:$8 sm:$0xf0]
    %vm42 = vcmask 1047556
    %v43 = vsel %vm42, %v41, %v40
    %vm44 = vcmask 64512
    %45 = vst.msk [vmem:[%s1] sm:$0xff] %vm44, %v43
    %s46 = scalar_lea.vmem [#allocation0], 3
    %v47 = vld [vmem:[%s46] ss:$8 sm:$0xf]
    %s48 = scalar_lea.vmem [#allocation0], 3
    %v49 = vld [vmem:[%s48] ss:$8 sm:$0xf0]
    %vm50 = vcmask 1047556
    %v51 = vsel %vm50, %v49, %v47
    %52 = vrot.lane.b32.xlu0 %v51, 24
    %v53 = vpop.permute.xlu0 %52
    %vm54 = vcmask 261312
    %55 = vst.msk [vmem:[%s1] sm:$0xff] %vm54, %v53
    %s56 = scalar_lea.vmem [#allocation0], 2
    %v57 = vld [vmem:[%s56] ss:$8 sm:$0xf]
    %s58 = scalar_lea.vmem [#allocation0], 2
    %v59 = vld [vmem:[%s58] ss:$8 sm:$0xf0]
    %vm60 = vcmask 1047556
    %v61 = vsel %vm60, %v59, %v57
    %62 = vrot.lane.b32.xlu0 %v61, 16
    %v63 = vpop.permute.xlu0 %62
    %vm64 = vcmask 195712
    %65 = vst.msk [vmem:[%s1] sm:$0xff] %vm64, %v63
    %s66 = scalar_lea.vmem [#allocation0], 1
    %v67 = vld [vmem:[%s66] ss:$8 sm:$0xf]
    %s68 = scalar_lea.vmem [#allocation0], 1
    %v69 = vld [vmem:[%s68] ss:$8 sm:$0xf0]
    %vm70 = vcmask 1047556
    %v71 = vsel %vm70, %v69, %v67
    %72 = vrot.lane.b32.xlu0 %v71, 8
    %v73 = vpop.permute.xlu0 %72
    %vm74 = vcmask 130112
    %75 = vst.msk [vmem:[%s1] sm:$0xff] %vm74, %v73

// kernel: _lambda_.1
$region0: #{_lambda_.1}
  #allocation0 [shape = 'u32[]', space=smem, size = 0x4, offset = 0x4, fixed_abs, tag = 'smem constant byte address 0x4 - core index']
  #allocation1 [shape = 'u32[144,128]{1,0:T(1,128)}', space=vmem, size = 0x12000, scoped, tag = 'internal scratch']
  #allocation2 [shape = 'f32[8,32]{1,0:T(8,128)}', space=vmem, size = 0x1000, scoped, tag = 'scratch operand']
  %s0 = inlined_call_operand.vmem [shape: f32[16,32], index: 0, kind: input, shape index: {}]
  %s1 = inlined_call_operand.vmem [shape: f32[2,1,32], index: 1, kind: input, shape index: {}, may-alias: {1,7}]
  %s2 = inlined_call_operand.vmem [shape: f32[2,1,32], index: 2, kind: input, shape index: {}, may-alias: {2,8}]
  %s3 = inlined_call_operand.vmem [shape: f32[2,32,96], index: 3, kind: input, shape index: {}]
  %s4 = inlined_call_operand.vmem [shape: f32[2,1,96], index: 4, kind: input, shape index: {}]
  %s5 = inlined_call_operand.vmem [shape: f32[2,32,32], index: 5, kind: input, shape index: {}]
  %s6 = inlined_call_operand.vmem [shape: f32[2,1,32], index: 6, kind: input, shape index: {}]
  %s7 = inlined_call_operand.vmem [shape: f32[2,1,32], index: 7, kind: input, shape index: {}, may-alias: {1,7}]
  %s8 = inlined_call_operand.vmem [shape: f32[2,1,32], index: 8, kind: input, shape index: {}, may-alias: {2,8}]
  %s9 = inlined_call_operand.vmem [shape: f32[2,32,64], index: 9, kind: input, shape index: {}]
  %s10 = inlined_call_operand.vmem [shape: f32[2,1,64], index: 10, kind: input, shape index: {}]
  %s11 = inlined_call_operand.vmem [shape: f32[2,64,32], index: 11, kind: input, shape index: {}]
  %s12 = inlined_call_operand.vmem [shape: f32[2,1,32], index: 12, kind: input, shape index: {}]
  %s13 = inlined_call_operand.vmem [shape: f32[8,32], index: 13, kind: input, shape index: {}]
  %s14 = inlined_call_operand.vmem [shape: f32[8,32], index: 14, kind: input, shape index: {}]
  %s15 = inlined_call_operand.vmem [shape: f32[1,32], index: 15, kind: input, shape index: {}]
  %s16 = inlined_call_operand.vmem [shape: f32[1,32], index: 16, kind: input, shape index: {}]
  %s17 = inlined_call_operand.hbm [shape: f32[16,32], index: 17, kind: output, shape index: {}]
  %s18 = sld [smem:[#allocation0]]
  $region109: #{_lambda_.1} parent=0
    _
  %s20 = ssub.s32 1, %s18
  %s21 = scalar_select 0, %s20, %s18
  $region1: #{_lambda_.1} parent=0
    #allocation3 [shape = 'u8[8192]{0}', space=vmem, size = 0x2000, scoped, tag = 'output window, operand 0']
    #allocation4 [shape = 's32[2]{0}', space=sflag, size = 0x8, scoped, tag = 'scoped memory for _lambda_.1']
    %22 = vsyncpa [#allocation4], 0
    %s23 = scalar_lea.sflag [#allocation4], 1
    %24 = vsyncpa %s23, 0
    loop: start=0, step=1, limit=6
    $region2: #{_lambda_.1} parent=1 // loop_pre_header
      _
    $region3: #{_lambda_.1} parent=1 // loop_header
      %s26 = sphi 0, %s30
      %p27 = scmp.ge.s32.totalorder %s26, 6
      %s33 = sphi 0, %s45
      %s34 = sphi 0, %s41
      %s35 = sphi 0, %s33
      %s36 = sphi 0, %s34
      %s37 = sphi 0, %s35
      %s38 = sphi 0, %s36
      %s48 = sphi 0, %s50
      %s51 = sphi 0, %s48
      %s52 = sphi 0, %s51
      %s68 = sphi 0, %s52
      %s74 = sphi 0, %s76
      %s77 = sphi 0, %s74
      %s78 = sphi 0, %s77
      %s94 = sphi 0, %s78
      %s100 = sphi 0, %s102
      %s103 = sphi 0, %s100
      %s104 = sphi 0, %s103
      %s120 = sphi 0, %s104
      %s126 = sphi 0, %s128
      %s129 = sphi 0, %s126
      %s130 = sphi 0, %s129
      %s146 = sphi 0, %s130
      %s152 = sphi 0, %s154
      %s155 = sphi 0, %s152
      %s156 = sphi 0, %s155
      %s172 = sphi 0, %s156
      %s178 = sphi 0, %s180
      %s181 = sphi 0, %s178
      %s182 = sphi 0, %s181
      %s198 = sphi 0, %s182
      %s204 = sphi 0, %s206
      %s207 = sphi 0, %s204
      %s208 = sphi 0, %s207
      %s224 = sphi 0, %s208
      %s230 = sphi 0, %s232
      %s233 = sphi 0, %s230
      %s234 = sphi 0, %s233
      %s250 = sphi 0, %s234
      %s256 = sphi 0, %s258
      %s259 = sphi 0, %s256
      %s260 = sphi 0, %s259
      %s276 = sphi 0, %s260
      %s282 = sphi 0, %s284
      %s285 = sphi 0, %s282
      %s286 = sphi 0, %s285
      %s302 = sphi 0, %s286
      %s308 = sphi 0, %s310
      %s311 = sphi 0, %s308
      %s312 = sphi 0, %s311
      %s328 = sphi 0, %s312
      %s334 = sphi 0, %s336
      %s337 = sphi 0, %s334
      %s338 = sphi 0, %s337
      %s354 = sphi 0, %s338
      %s360 = sphi 0, %s362
      %s363 = sphi 0, %s360
      %s364 = sphi 0, %s363
      %s380 = sphi 0, %s364
      %s384 = sphi 0, %s384
      %s386 = sphi 0, %s384
      %s387 = sphi 0, %s386
      %s401 = sphi 0, %s387
      %s405 = sphi 0, %s405
      %s407 = sphi 0, %s405
      %s408 = sphi 0, %s407
      %s422 = sphi 0, %s408
      %s426 = sphi 0, %s426
      %s428 = sphi 0, %s426
      %s429 = sphi 0, %s428
      %s443 = sphi 0, %s429
      %s447 = sphi 0, %s447
      %s449 = sphi 0, %s447
      %s450 = sphi 0, %s449
      %s464 = sphi 0, %s450
      %s470 = sphi 0, %s472
      %s473 = sphi 0, %s470
      %s474 = sphi 0, %s473
      %s490 = sphi 0, %s474
    $region4: #{_lambda_.1} parent=1 // loop_header_branch
      %29 = sbr.rel (%p27) target = $region8
    $region5: #{_lambda_.1} parent=1 // loop_body
      %s31 = ssub.s32 %s26, 1
      %s32 = ssub.s32 %s26, 2
      %s39 = sadd.s32 1, %s34
      %p40 = scmp.ge.s32.totalorder %s39, 2
      %s41 = scalar_select %p40, 0, %s39
      %s42 = sadd.s32 1, %s33
      %s43 = scalar_select %p40, %s42, %s33
      %p44 = scmp.ge.s32.totalorder %s43, 2
      %s45 = scalar_select %p44, 0, %s43
      %s46 = ssub.s32 %s33, %s45
      %p47 = scmp.eq.s32.totalorder %s46, 0
      %s49 = sadd.s32 %s48, 1
      %s50 = scalar_select %p47, %s48, %s49
      %p53 = pneg %p47
      %p54 = scmp.eq.s32.totalorder %s26, 3
      %p55 = por %p53, %p54
      %p56 = scmp.ne.s32.totalorder %s48, %s51
      %p57 = scmp.eq.s32.totalorder %s26, 0
      %p58 = por %p56, %p57
      %p59 = scmp.ne.s32.totalorder %s48, %s51
      %p60 = scmp.eq.s32.totalorder %s31, 3
      %p61 = por %p59, %p60
      %p62 = scmp.ne.s32.totalorder %s51, %s52
      %p63 = scmp.eq.s32.totalorder %s31, 0
      %p64 = por %p62, %p63
      %p65 = scmp.ne.s32.totalorder %s51, %s52
      %p66 = scmp.eq.s32.totalorder %s32, 3
      %p67 = por %p65, %p66
      %p69 = scmp.ne.s32.totalorder %s52, %s68
      %p70 = scmp.eq.s32.totalorder %s32, 0
      %p71 = por %p69, %p70
      %s72 = ssub.s32 %s34, %s41
      %p73 = scmp.eq.s32.totalorder %s72, 0
      %s75 = sadd.s32 %s74, 1
      %s76 = scalar_select %p73, %s74, %s75
      %p79 = pneg %p73
      %p80 = scmp.eq.s32.totalorder %s26, 3
      %p81 = por %p79, %p80
      %p82 = scmp.ne.s32.totalorder %s74, %s77
      %p83 = scmp.eq.s32.totalorder %s26, 0
      %p84 = por %p82, %p83
      %p85 = scmp.ne.s32.totalorder %s74, %s77
      %p86 = scmp.eq.s32.totalorder %s31, 3
      %p87 = por %p85, %p86
      %p88 = scmp.ne.s32.totalorder %s77, %s78
      %p89 = scmp.eq.s32.totalorder %s31, 0
      %p90 = por %p88, %p89
      %p91 = scmp.ne.s32.totalorder %s77, %s78
      %p92 = scmp.eq.s32.totalorder %s32, 3
      %p93 = por %p91, %p92
      %p95 = scmp.ne.s32.totalorder %s78, %s94
      %p96 = scmp.eq.s32.totalorder %s32, 0
      %p97 = por %p95, %p96
      %s98 = ssub.s32 %s34, %s41
      %p99 = scmp.eq.s32.totalorder %s98, 0
      %s101 = sadd.s32 %s100, 1
      %s102 = scalar_select %p99, %s100, %s101
      %p105 = pneg %p99
      %p106 = scmp.eq.s32.totalorder %s26, 3
      %p107 = por %p105, %p106
      %p108 = scmp.ne.s32.totalorder %s100, %s103
      %p109 = scmp.eq.s32.totalorder %s26, 0
      %p110 = por %p108, %p109
      %p111 = scmp.ne.s32.totalorder %s100, %s103
      %p112 = scmp.eq.s32.totalorder %s31, 3
      %p113 = por %p111, %p112
      %p114 = scmp.ne.s32.totalorder %s103, %s104
      %p115 = scmp.eq.s32.totalorder %s31, 0
      %p116 = por %p114, %p115
      %p117 = scmp.ne.s32.totalorder %s103, %s104
      %p118 = scmp.eq.s32.totalorder %s32, 3
      %p119 = por %p117, %p118
      %p121 = scmp.ne.s32.totalorder %s104, %s120
      %p122 = scmp.eq.s32.totalorder %s32, 0
      %p123 = por %p121, %p122
      %s124 = ssub.s32 %s34, %s41
      %p125 = scmp.eq.s32.totalorder %s124, 0
      %s127 = sadd.s32 %s126, 1
      %s128 = scalar_select %p125, %s126, %s127
      %p131 = pneg %p125
      %p132 = scmp.eq.s32.totalorder %s26, 3
      %p133 = por %p131, %p132
      %p134 = scmp.ne.s32.totalorder %s126, %s129
      %p135 = scmp.eq.s32.totalorder %s26, 0
      %p136 = por %p134, %p135
      %p137 = scmp.ne.s32.totalorder %s126, %s129
      %p138 = scmp.eq.s32.totalorder %s31, 3
      %p139 = por %p137, %p138
      %p140 = scmp.ne.s32.totalorder %s129, %s130
      %p141 = scmp.eq.s32.totalorder %s31, 0
      %p142 = por %p140, %p141
      %p143 = scmp.ne.s32.totalorder %s129, %s130
      %p144 = scmp.eq.s32.totalorder %s32, 3
      %p145 = por %p143, %p144
      %p147 = scmp.ne.s32.totalorder %s130, %s146
      %p148 = scmp.eq.s32.totalorder %s32, 0
      %p149 = por %p147, %p148
      %s150 = ssub.s32 %s34, %s41
      %p151 = scmp.eq.s32.totalorder %s150, 0
      %s153 = sadd.s32 %s152, 1
      %s154 = scalar_select %p151, %s152, %s153
      %p157 = pneg %p151
      %p158 = scmp.eq.s32.totalorder %s26, 3
      %p159 = por %p157, %p158
      %p160 = scmp.ne.s32.totalorder %s152, %s155
      %p161 = scmp.eq.s32.totalorder %s26, 0
      %p162 = por %p160, %p161
      %p163 = scmp.ne.s32.totalorder %s152, %s155
      %p164 = scmp.eq.s32.totalorder %s31, 3
      %p165 = por %p163, %p164
      %p166 = scmp.ne.s32.totalorder %s155, %s156
      %p167 = scmp.eq.s32.totalorder %s31, 0
      %p168 = por %p166, %p167
      %p169 = scmp.ne.s32.totalorder %s155, %s156
      %p170 = scmp.eq.s32.totalorder %s32, 3
      %p171 = por %p169, %p170
      %p173 = scmp.ne.s32.totalorder %s156, %s172
      %p174 = scmp.eq.s32.totalorder %s32, 0
      %p175 = por %p173, %p174
      %s176 = ssub.s32 %s34, %s41
      %p177 = scmp.eq.s32.totalorder %s176, 0
      %s179 = sadd.s32 %s178, 1
      %s180 = scalar_select %p177, %s178, %s179
      %p183 = pneg %p177
      %p184 = scmp.eq.s32.totalorder %s26, 3
      %p185 = por %p183, %p184
      %p186 = scmp.ne.s32.totalorder %s178, %s181
      %p187 = scmp.eq.s32.totalorder %s26, 0
      %p188 = por %p186, %p187
      %p189 = scmp.ne.s32.totalorder %s178, %s181
      %p190 = scmp.eq.s32.totalorder %s31, 3
      %p191 = por %p189, %p190
      %p192 = scmp.ne.s32.totalorder %s181, %s182
      %p193 = scmp.eq.s32.totalorder %s31, 0
      %p194 = por %p192, %p193
      %p195 = scmp.ne.s32.totalorder %s181, %s182
      %p196 = scmp.eq.s32.totalorder %s32, 3
      %p197 = por %p195, %p196
      %p199 = scmp.ne.s32.totalorder %s182, %s198
      %p200 = scmp.eq.s32.totalorder %s32, 0
      %p201 = por %p199, %p200
      %s202 = ssub.s32 %s34, %s41
      %p203 = scmp.eq.s32.totalorder %s202, 0
      %s205 = sadd.s32 %s204, 1
      %s206 = scalar_select %p203, %s204, %s205
      %p209 = pneg %p203
      %p210 = scmp.eq.s32.totalorder %s26, 3
      %p211 = por %p209, %p210
      %p212 = scmp.ne.s32.totalorder %s204, %s207
      %p213 = scmp.eq.s32.totalorder %s26, 0
      %p214 = por %p212, %p213
      %p215 = scmp.ne.s32.totalorder %s204, %s207
      %p216 = scmp.eq.s32.totalorder %s31, 3
      %p217 = por %p215, %p216
      %p218 = scmp.ne.s32.totalorder %s207, %s208
      %p219 = scmp.eq.s32.totalorder %s31, 0
      %p220 = por %p218, %p219
      %p221 = scmp.ne.s32.totalorder %s207, %s208
      %p222 = scmp.eq.s32.totalorder %s32, 3
      %p223 = por %p221, %p222
      %p225 = scmp.ne.s32.totalorder %s208, %s224
      %p226 = scmp.eq.s32.totalorder %s32, 0
      %p227 = por %p225, %p226
      %s228 = ssub.s32 %s34, %s41
      %p229 = scmp.eq.s32.totalorder %s228, 0
      %s231 = sadd.s32 %s230, 1
      %s232 = scalar_select %p229, %s230, %s231
      %p235 = pneg %p229
      %p236 = scmp.eq.s32.totalorder %s26, 3
      %p237 = por %p235, %p236
      %p238 = scmp.ne.s32.totalorder %s230, %s233
      %p239 = scmp.eq.s32.totalorder %s26, 0
      %p240 = por %p238, %p239
      %p241 = scmp.ne.s32.totalorder %s230, %s233
      %p242 = scmp.eq.s32.totalorder %s31, 3
      %p243 = por %p241, %p242
      %p244 = scmp.ne.s32.totalorder %s233, %s234
      %p245 = scmp.eq.s32.totalorder %s31, 0
      %p246 = por %p244, %p245
      %p247 = scmp.ne.s32.totalorder %s233, %s234
      %p248 = scmp.eq.s32.totalorder %s32, 3
      %p249 = por %p247, %p248
      %p251 = scmp.ne.s32.totalorder %s234, %s250
      %p252 = scmp.eq.s32.totalorder %s32, 0
      %p253 = por %p251, %p252
      %s254 = ssub.s32 %s34, %s41
      %p255 = scmp.eq.s32.totalorder %s254, 0
      %s257 = sadd.s32 %s256, 1
      %s258 = scalar_select %p255, %s256, %s257
      %p261 = pneg %p255
      %p262 = scmp.eq.s32.totalorder %s26, 3
      %p263 = por %p261, %p262
      %p264 = scmp.ne.s32.totalorder %s256, %s259
      %p265 = scmp.eq.s32.totalorder %s26, 0
      %p266 = por %p264, %p265
      %p267 = scmp.ne.s32.totalorder %s256, %s259
      %p268 = scmp.eq.s32.totalorder %s31, 3
      %p269 = por %p267, %p268
      %p270 = scmp.ne.s32.totalorder %s259, %s260
      %p271 = scmp.eq.s32.totalorder %s31, 0
      %p272 = por %p270, %p271
      %p273 = scmp.ne.s32.totalorder %s259, %s260
      %p274 = scmp.eq.s32.totalorder %s32, 3
      %p275 = por %p273, %p274
      %p277 = scmp.ne.s32.totalorder %s260, %s276
      %p278 = scmp.eq.s32.totalorder %s32, 0
      %p279 = por %p277, %p278
      %s280 = ssub.s32 %s34, %s41
      %p281 = scmp.eq.s32.totalorder %s280, 0
      %s283 = sadd.s32 %s282, 1
      %s284 = scalar_select %p281, %s282, %s283
      %p287 = pneg %p281
      %p288 = scmp.eq.s32.totalorder %s26, 3
      %p289 = por %p287, %p288
      %p290 = scmp.ne.s32.totalorder %s282, %s285
      %p291 = scmp.eq.s32.totalorder %s26, 0
      %p292 = por %p290, %p291
      %p293 = scmp.ne.s32.totalorder %s282, %s285
      %p294 = scmp.eq.s32.totalorder %s31, 3
      %p295 = por %p293, %p294
      %p296 = scmp.ne.s32.totalorder %s285, %s286
      %p297 = scmp.eq.s32.totalorder %s31, 0
      %p298 = por %p296, %p297
      %p299 = scmp.ne.s32.totalorder %s285, %s286
      %p300 = scmp.eq.s32.totalorder %s32, 3
      %p301 = por %p299, %p300
      %p303 = scmp.ne.s32.totalorder %s286, %s302
      %p304 = scmp.eq.s32.totalorder %s32, 0
      %p305 = por %p303, %p304
      %s306 = ssub.s32 %s34, %s41
      %p307 = scmp.eq.s32.totalorder %s306, 0
      %s309 = sadd.s32 %s308, 1
      %s310 = scalar_select %p307, %s308, %s309
      %p313 = pneg %p307
      %p314 = scmp.eq.s32.totalorder %s26, 3
      %p315 = por %p313, %p314
      %p316 = scmp.ne.s32.totalorder %s308, %s311
      %p317 = scmp.eq.s32.totalorder %s26, 0
      %p318 = por %p316, %p317
      %p319 = scmp.ne.s32.totalorder %s308, %s311
      %p320 = scmp.eq.s32.totalorder %s31, 3
      %p321 = por %p319, %p320
      %p322 = scmp.ne.s32.totalorder %s311, %s312
      %p323 = scmp.eq.s32.totalorder %s31, 0
      %p324 = por %p322, %p323
      %p325 = scmp.ne.s32.totalorder %s311, %s312
      %p326 = scmp.eq.s32.totalorder %s32, 3
      %p327 = por %p325, %p326
      %p329 = scmp.ne.s32.totalorder %s312, %s328
      %p330 = scmp.eq.s32.totalorder %s32, 0
      %p331 = por %p329, %p330
      %s332 = ssub.s32 %s34, %s41
      %p333 = scmp.eq.s32.totalorder %s332, 0
      %s335 = sadd.s32 %s334, 1
      %s336 = scalar_select %p333, %s334, %s335
      %p339 = pneg %p333
      %p340 = scmp.eq.s32.totalorder %s26, 3
      %p341 = por %p339, %p340
      %p342 = scmp.ne.s32.totalorder %s334, %s337
      %p343 = scmp.eq.s32.totalorder %s26, 0
      %p344 = por %p342, %p343
      %p345 = scmp.ne.s32.totalorder %s334, %s337
      %p346 = scmp.eq.s32.totalorder %s31, 3
      %p347 = por %p345, %p346
      %p348 = scmp.ne.s32.totalorder %s337, %s338
      %p349 = scmp.eq.s32.totalorder %s31, 0
      %p350 = por %p348, %p349
      %p351 = scmp.ne.s32.totalorder %s337, %s338
      %p352 = scmp.eq.s32.totalorder %s32, 3
      %p353 = por %p351, %p352
      %p355 = scmp.ne.s32.totalorder %s338, %s354
      %p356 = scmp.eq.s32.totalorder %s32, 0
      %p357 = por %p355, %p356
      %s358 = ssub.s32 %s34, %s41
      %p359 = scmp.eq.s32.totalorder %s358, 0
      %s361 = sadd.s32 %s360, 1
      %s362 = scalar_select %p359, %s360, %s361
      %p365 = pneg %p359
      %p366 = scmp.eq.s32.totalorder %s26, 3
      %p367 = por %p365, %p366
      %p368 = scmp.ne.s32.totalorder %s360, %s363
      %p369 = scmp.eq.s32.totalorder %s26, 0
      %p370 = por %p368, %p369
      %p371 = scmp.ne.s32.totalorder %s360, %s363
      %p372 = scmp.eq.s32.totalorder %s31, 3
      %p373 = por %p371, %p372
      %p374 = scmp.ne.s32.totalorder %s363, %s364
      %p375 = scmp.eq.s32.totalorder %s31, 0
      %p376 = por %p374, %p375
      %p377 = scmp.ne.s32.totalorder %s363, %s364
      %p378 = scmp.eq.s32.totalorder %s32, 3
      %p379 = por %p377, %p378
      %p381 = scmp.ne.s32.totalorder %s364, %s380
      %p382 = scmp.eq.s32.totalorder %s32, 0
      %p383 = por %p381, %p382
      %s385 = sadd.s32 %s384, 1
      %p388 = scmp.eq.s32.totalorder %s26, 3
      %p389 = scmp.ne.s32.totalorder %s384, %s386
      %p390 = scmp.eq.s32.totalorder %s26, 0
      %p391 = por %p389, %p390
      %p392 = scmp.ne.s32.totalorder %s384, %s386
      %p393 = scmp.eq.s32.totalorder %s31, 3
      %p394 = por %p392, %p393
      %p395 = scmp.ne.s32.totalorder %s386, %s387
      %p396 = scmp.eq.s32.totalorder %s31, 0
      %p397 = por %p395, %p396
      %p398 = scmp.ne.s32.totalorder %s386, %s387
      %p399 = scmp.eq.s32.totalorder %s32, 3
      %p400 = por %p398, %p399
      %p402 = scmp.ne.s32.totalorder %s387, %s401
      %p403 = scmp.eq.s32.totalorder %s32, 0
      %p404 = por %p402, %p403
      %s406 = sadd.s32 %s405, 1
      %p409 = scmp.eq.s32.totalorder %s26, 3
      %p410 = scmp.ne.s32.totalorder %s405, %s407
      %p411 = scmp.eq.s32.totalorder %s26, 0
      %p412 = por %p410, %p411
      %p413 = scmp.ne.s32.totalorder %s405, %s407
      %p414 = scmp.eq.s32.totalorder %s31, 3
      %p415 = por %p413, %p414
      %p416 = scmp.ne.s32.totalorder %s407, %s408
      %p417 = scmp.eq.s32.totalorder %s31, 0
      %p418 = por %p416, %p417
      %p419 = scmp.ne.s32.totalorder %s407, %s408
      %p420 = scmp.eq.s32.totalorder %s32, 3
      %p421 = por %p419, %p420
      %p423 = scmp.ne.s32.totalorder %s408, %s422
      %p424 = scmp.eq.s32.totalorder %s32, 0
      %p425 = por %p423, %p424
      %s427 = sadd.s32 %s426, 1
      %p430 = scmp.eq.s32.totalorder %s26, 3
      %p431 = scmp.ne.s32.totalorder %s426, %s428
      %p432 = scmp.eq.s32.totalorder %s26, 0
      %p433 = por %p431, %p432
      %p434 = scmp.ne.s32.totalorder %s426, %s428
      %p435 = scmp.eq.s32.totalorder %s31, 3
      %p436 = por %p434, %p435
      %p437 = scmp.ne.s32.totalorder %s428, %s429
      %p438 = scmp.eq.s32.totalorder %s31, 0
      %p439 = por %p437, %p438
      %p440 = scmp.ne.s32.totalorder %s428, %s429
      %p441 = scmp.eq.s32.totalorder %s32, 3
      %p442 = por %p440, %p441
      %p444 = scmp.ne.s32.totalorder %s429, %s443
      %p445 = scmp.eq.s32.totalorder %s32, 0
      %p446 = por %p444, %p445
      %s448 = sadd.s32 %s447, 1
      %p451 = scmp.eq.s32.totalorder %s26, 3
      %p452 = scmp.ne.s32.totalorder %s447, %s449
      %p453 = scmp.eq.s32.totalorder %s26, 0
      %p454 = por %p452, %p453
      %p455 = scmp.ne.s32.totalorder %s447, %s449
      %p456 = scmp.eq.s32.totalorder %s31, 3
      %p457 = por %p455, %p456
      %p458 = scmp.ne.s32.totalorder %s449, %s450
      %p459 = scmp.eq.s32.totalorder %s31, 0
      %p460 = por %p458, %p459
      %p461 = scmp.ne.s32.totalorder %s449, %s450
      %p462 = scmp.eq.s32.totalorder %s32, 3
      %p463 = por %p461, %p462
      %p465 = scmp.ne.s32.totalorder %s450, %s464
      %p466 = scmp.eq.s32.totalorder %s32, 0
      %p467 = por %p465, %p466
      %s468 = ssub.s32 %s33, %s45
      %p469 = scmp.eq.s32.totalorder %s468, 0
      %s471 = sadd.s32 %s470, 1
      %s472 = scalar_select %p469, %s470, %s471
      %p475 = pneg %p469
      %p476 = scmp.eq.s32.totalorder %s26, 3
      %p477 = por %p475, %p476
      %p478 = scmp.ne.s32.totalorder %s470, %s473
      %p479 = scmp.eq.s32.totalorder %s26, 0
      %p480 = por %p478, %p479
      %p481 = scmp.ne.s32.totalorder %s470, %s473
      %p482 = scmp.eq.s32.totalorder %s31, 3
      %p483 = por %p481, %p482
      %p484 = scmp.ne.s32.totalorder %s473, %s474
      %p485 = scmp.eq.s32.totalorder %s31, 0
      %p486 = por %p484, %p485
      %p487 = scmp.ne.s32.totalorder %s473, %s474
      %p488 = scmp.eq.s32.totalorder %s32, 3
      %p489 = por %p487, %p488
      %p491 = scmp.ne.s32.totalorder %s474, %s490
      %p492 = scmp.eq.s32.totalorder %s32, 0
      %p493 = por %p491, %p492
      %p494 = scmp.le.s32.totalorder 1, %s26
      %p495 = scmp.lt.s32.totalorder %s26, 5
      %p496 = pnand %p494, %p495
      %p497 = pneg %p496
      // Predicated region
      $region9: #{_lambda_.1} parent=5 // pred_check
        _
      $region10: #{_lambda_.1} parent=5 // pred_check_branch
        %499 = sbr.rel (%p496) target = $region12
      $region11: #{_lambda_.1} parent=5 // pred_region
        %s500 = ssub.s32 %s26, 1
        // Predicated region
        $region13: #{_lambda_.1} parent=11 // pred_check
          %p501 = pneg %p397
        $region14: #{_lambda_.1} parent=11 // pred_check_branch
          %503 = sbr.rel (%p501) target = $region16
        $region15: #{_lambda_.1} parent=11 // pred_region
          _
        $region16: #{_lambda_.1} parent=11 // pred_fallthru
          _
        // Predicated region
        $region17: #{_lambda_.1} parent=11 // pred_check
          %p504 = pneg %p418
        $region18: #{_lambda_.1} parent=11 // pred_check_branch
          %506 = sbr.rel (%p504) target = $region20
        $region19: #{_lambda_.1} parent=11 // pred_region
          _
        $region20: #{_lambda_.1} parent=11 // pred_fallthru
          _
        // Predicated region
        $region21: #{_lambda_.1} parent=11 // pred_check
          %p507 = pneg %p439
        $region22: #{_lambda_.1} parent=11 // pred_check_branch
          %509 = sbr.rel (%p507) target = $region24
        $region23: #{_lambda_.1} parent=11 // pred_region
          _
        $region24: #{_lambda_.1} parent=11 // pred_fallthru
          _
        // Predicated region
        $region25: #{_lambda_.1} parent=11 // pred_check
          %p510 = pneg %p460
        $region26: #{_lambda_.1} parent=11 // pred_check_branch
          %512 = sbr.rel (%p510) target = $region28
        $region27: #{_lambda_.1} parent=11 // pred_region
          _
        $region28: #{_lambda_.1} parent=11 // pred_fallthru
          _
      $region12: #{_lambda_.1} parent=5 // pred_fallthru
        _
      %p513 = scmp.lt.s32.totalorder %s26, 4
      // Predicated region
      $region29: #{_lambda_.1} parent=5 // pred_check
        %p514 = pneg %p513
      $region30: #{_lambda_.1} parent=5 // pred_check_branch
        %516 = sbr.rel (%p514) target = $region32
      $region31: #{_lambda_.1} parent=5 // pred_region
        // Predicated region
        $region33: #{_lambda_.1} parent=31 // pred_check
          %p517 = pneg %p58
        $region34: #{_lambda_.1} parent=31 // pred_check_branch
          %519 = sbr.rel (%p517) target = $region36
        $region35: #{_lambda_.1} parent=31 // pred_region
          %p520 = scmp.lt.s32.totalorder %s33, 1
          %s521 = scalar_select %p520, %s33, 1
          %s522 = smul.addr %s521, 8
          %s523 = scalar_lea.vmem %s0, %s522
        $region36: #{_lambda_.1} parent=31 // pred_fallthru
          _
        // Predicated region
        $region37: #{_lambda_.1} parent=31 // pred_check
          %p524 = pneg %p84
        $region38: #{_lambda_.1} parent=31 // pred_check_branch
          %526 = sbr.rel (%p524) target = $region40
        $region39: #{_lambda_.1} parent=31 // pred_region
          %p527 = scmp.lt.s32.totalorder %s34, 1
          %s528 = scalar_select %p527, %s34, 1
          %s529 = scalar_lea.vmem %s1, %s528
        $region40: #{_lambda_.1} parent=31 // pred_fallthru
          _
        // Predicated region
        $region41: #{_lambda_.1} parent=31 // pred_check
          %p530 = pneg %p110
        $region42: #{_lambda_.1} parent=31 // pred_check_branch
          %532 = sbr.rel (%p530) target = $region44
        $region43: #{_lambda_.1} parent=31 // pred_region
          %p533 = scmp.lt.s32.totalorder %s34, 1
          %s534 = scalar_select %p533, %s34, 1
          %s535 = scalar_lea.vmem %s2, %s534
        $region44: #{_lambda_.1} parent=31 // pred_fallthru
          _
        // Predicated region
        $region45: #{_lambda_.1} parent=31 // pred_check
          %p536 = pneg %p136
        $region46: #{_lambda_.1} parent=31 // pred_check_branch
          %538 = sbr.rel (%p536) target = $region48
        $region47: #{_lambda_.1} parent=31 // pred_region
          %p539 = scmp.lt.s32.totalorder %s34, 1
          %s540 = scalar_select %p539, %s34, 1
          %s541 = smul.addr %s540, 4
          %s542 = smul.addr %s541, 8
          %s543 = scalar_lea.vmem %s3, %s542
        $region48: #{_lambda_.1} parent=31 // pred_fallthru
          _
        // Predicated region
        $region49: #{_lambda_.1} parent=31 // pred_check
          %p544 = pneg %p162
        $region50: #{_lambda_.1} parent=31 // pred_check_branch
          %546 = sbr.rel (%p544) target = $region52
        $region51: #{_lambda_.1} parent=31 // pred_region
          %p547 = scmp.lt.s32.totalorder %s34, 1
          %s548 = scalar_select %p547, %s34, 1
          %s549 = scalar_lea.vmem %s4, %s548
        $region52: #{_lambda_.1} parent=31 // pred_fallthru
          _
        // Predicated region
        $region53: #{_lambda_.1} parent=31 // pred_check
          %p550 = pneg %p188
        $region54: #{_lambda_.1} parent=31 // pred_check_branch
          %552 = sbr.rel (%p550) target = $region56
        $region55: #{_lambda_.1} parent=31 // pred_region
          %p553 = scmp.lt.s32.totalorder %s34, 1
          %s554 = scalar_select %p553, %s34, 1
          %s555 = smul.addr %s554, 4
          %s556 = smul.addr %s555, 8
          %s557 = scalar_lea.vmem %s5, %s556
        $region56: #{_lambda_.1} parent=31 // pred_fallthru
          _
        // Predicated region
        $region57: #{_lambda_.1} parent=31 // pred_check
          %p558 = pneg %p214
        $region58: #{_lambda_.1} parent=31 // pred_check_branch
          %560 = sbr.rel (%p558) target = $region60
        $region59: #{_lambda_.1} parent=31 // pred_region
          %p561 = scmp.lt.s32.totalorder %s34, 1
          %s562 = scalar_select %p561, %s34, 1
          %s563 = scalar_lea.vmem %s6, %s562
        $region60: #{_lambda_.1} parent=31 // pred_fallthru
          _
        // Predicated region
        $region61: #{_lambda_.1} parent=31 // pred_check
          %p564 = pneg %p240
        $region62: #{_lambda_.1} parent=31 // pred_check_branch
          %566 = sbr.rel (%p564) target = $region64
        $region63: #{_lambda_.1} parent=31 // pred_region
          %p567 = scmp.lt.s32.totalorder %s34, 1
          %s568 = scalar_select %p567, %s34, 1
          %s569 = scalar_lea.vmem %s7, %s568
        $region64: #{_lambda_.1} parent=31 // pred_fallthru
          _
        // Predicated region
        $region65: #{_lambda_.1} parent=31 // pred_check
          %p570 = pneg %p266
        $region66: #{_lambda_.1} parent=31 // pred_check_branch
          %572 = sbr.rel (%p570) target = $region68
        $region67: #{_lambda_.1} parent=31 // pred_region
          %p573 = scmp.lt.s32.totalorder %s34, 1
          %s574 = scalar_select %p573, %s34, 1
          %s575 = scalar_lea.vmem %s8, %s574
        $region68: #{_lambda_.1} parent=31 // pred_fallthru
          _
        // Predicated region
        $region69: #{_lambda_.1} parent=31 // pred_check
          %p576 = pneg %p292
        $region70: #{_lambda_.1} parent=31 // pred_check_branch
          %578 = sbr.rel (%p576) target = $region72
        $region71: #{_lambda_.1} parent=31 // pred_region
          %p579 = scmp.lt.s32.totalorder %s34, 1
          %s580 = scalar_select %p579, %s34, 1
          %s581 = smul.addr %s580, 4
          %s582 = smul.addr %s581, 8
          %s583 = scalar_lea.vmem %s9, %s582
        $region72: #{_lambda_.1} parent=31 // pred_fallthru
          _
        // Predicated region
        $region73: #{_lambda_.1} parent=31 // pred_check
          %p584 = pneg %p318
        $region74: #{_lambda_.1} parent=31 // pred_check_branch
          %586 = sbr.rel (%p584) target = $region76
        $region75: #{_lambda_.1} parent=31 // pred_region
          %p587 = scmp.lt.s32.totalorder %s34, 1
          %s588 = scalar_select %p587, %s34, 1
          %s589 = scalar_lea.vmem %s10, %s588
        $region76: #{_lambda_.1} parent=31 // pred_fallthru
          _
        // Predicated region
        $region77: #{_lambda_.1} parent=31 // pred_check
          %p590 = pneg %p344
        $region78: #{_lambda_.1} parent=31 // pred_check_branch
          %592 = sbr.rel (%p590) target = $region80
        $region79: #{_lambda_.1} parent=31 // pred_region
          %p593 = scmp.lt.s32.totalorder %s34, 1
          %s594 = scalar_select %p593, %s34, 1
          %s595 = smul.addr %s594, 8
          %s596 = smul.addr %s595, 8
          %s597 = scalar_lea.vmem %s11, %s596
        $region80: #{_lambda_.1} parent=31 // pred_fallthru
          _
        // Predicated region
        $region81: #{_lambda_.1} parent=31 // pred_check
          %p598 = pneg %p370
        $region82: #{_lambda_.1} parent=31 // pred_check_branch
          %600 = sbr.rel (%p598) target = $region84
        $region83: #{_lambda_.1} parent=31 // pred_region
          %p601 = scmp.lt.s32.totalorder %s34, 1
          %s602 = scalar_select %p601, %s34, 1
          %s603 = scalar_lea.vmem %s12, %s602
        $region84: #{_lambda_.1} parent=31 // pred_fallthru
          _
      $region32: #{_lambda_.1} parent=5 // pred_fallthru
        _
      %p604 = scmp.le.s32.totalorder 1, %s26
      %p605 = scmp.lt.s32.totalorder %s26, 5
      %p606 = pnand %p604, %p605
      %p607 = pneg %p606
      // Predicated region
      $region85: #{_lambda_.1} parent=5 // pred_check
        _
      $region86: #{_lambda_.1} parent=5 // pred_check_branch
        %609 = sbr.rel (%p606) target = $region88
      $region87: #{_lambda_.1} parent=5 // pred_region
        %s610 = ssub.s32 %s26, 1
        %p611 = scmp.lt.s32.totalorder %s35, 1
        %s612 = scalar_select %p611, %s35, 1
        %s613 = smul.addr %s612, 8
        %s614 = scalar_lea.vmem %s0, %s613
        %p615 = pneg %p64
        %p616 = pneg %p61
        %p617 = scmp.lt.s32.totalorder %s36, 1
        %s618 = scalar_select %p617, %s36, 1
        %s619 = scalar_lea.vmem %s1, %s618
        %p620 = pneg %p90
        %p621 = pneg %p87
        %p622 = scmp.lt.s32.totalorder %s36, 1
        %s623 = scalar_select %p622, %s36, 1
        %s624 = scalar_lea.vmem %s2, %s623
        %p625 = pneg %p116
        %p626 = pneg %p113
        %p627 = scmp.lt.s32.totalorder %s36, 1
        %s628 = scalar_select %p627, %s36, 1
        %s629 = smul.addr %s628, 4
        %s630 = smul.addr %s629, 8
        %s631 = scalar_lea.vmem %s3, %s630
        %p632 = pneg %p142
        %p633 = pneg %p139
        %p634 = scmp.lt.s32.totalorder %s36, 1
        %s635 = scalar_select %p634, %s36, 1
        %s636 = scalar_lea.vmem %s4, %s635
        %p637 = pneg %p168
        %p638 = pneg %p165
        %p639 = scmp.lt.s32.totalorder %s36, 1
        %s640 = scalar_select %p639, %s36, 1
        %s641 = smul.addr %s640, 4
        %s642 = smul.addr %s641, 8
        %s643 = scalar_lea.vmem %s5, %s642
        %p644 = pneg %p194
        %p645 = pneg %p191
        %p646 = scmp.lt.s32.totalorder %s36, 1
        %s647 = scalar_select %p646, %s36, 1
        %s648 = scalar_lea.vmem %s6, %s647
        %p649 = pneg %p220
        %p650 = pneg %p217
        %p651 = scmp.lt.s32.totalorder %s36, 1
        %s652 = scalar_select %p651, %s36, 1
        %s653 = scalar_lea.vmem %s7, %s652
        %p654 = pneg %p246
        %p655 = pneg %p243
        %p656 = scmp.lt.s32.totalorder %s36, 1
        %s657 = scalar_select %p656, %s36, 1
        %s658 = scalar_lea.vmem %s8, %s657
        %p659 = pneg %p272
        %p660 = pneg %p269
        %p661 = scmp.lt.s32.totalorder %s36, 1
        %s662 = scalar_select %p661, %s36, 1
        %s663 = smul.addr %s662, 4
        %s664 = smul.addr %s663, 8
        %s665 = scalar_lea.vmem %s9, %s664
        %p666 = pneg %p298
        %p667 = pneg %p295
        %p668 = scmp.lt.s32.totalorder %s36, 1
        %s669 = scalar_select %p668, %s36, 1
        %s670 = scalar_lea.vmem %s10, %s669
        %p671 = pneg %p324
        %p672 = pneg %p321
        %p673 = scmp.lt.s32.totalorder %s36, 1
        %s674 = scalar_select %p673, %s36, 1
        %s675 = smul.addr %s674, 8
        %s676 = smul.addr %s675, 8
        %s677 = scalar_lea.vmem %s11, %s676
        %p678 = pneg %p350
        %p679 = pneg %p347
        %p680 = scmp.lt.s32.totalorder %s36, 1
        %s681 = scalar_select %p680, %s36, 1
        %s682 = scalar_lea.vmem %s12, %s681
        %p683 = pneg %p376
        %p684 = pneg %p373
        %p685 = pneg %p397
        %p686 = pneg %p394
        %p687 = pneg %p418
        %p688 = pneg %p415
        %p689 = pneg %p439
        %p690 = pneg %p436
        %p691 = pneg %p460
        %p692 = pneg %p457
        %p693 = pneg %p486
        %p694 = pneg %p483
        %s695 = sand.u32 %s473, 1
        %s696 = scalar_lea.sflag [#allocation4], %s695
        %s697 = sand.u32 %s473, 1
        %s698 = smul.addr %s697, 8
        %s699 = scalar_lea.vmem [#allocation3], %s698
        %p700 = scmp.lt.s32.totalorder %s35, 1
        %s701 = scalar_select %p700, %s35, 1
        %s702 = smul.addr %s701, 8
        %s703 = scalar_lea.vmem %s0, %s702
        %p704 = scmp.lt.s32.totalorder %s36, 1
        %s705 = scalar_select %p704, %s36, 1
        %s706 = scalar_lea.vmem %s1, %s705
        %p707 = scmp.lt.s32.totalorder %s36, 1
        %s708 = scalar_select %p707, %s36, 1
        %s709 = scalar_lea.vmem %s2, %s708
        %p710 = scmp.lt.s32.totalorder %s36, 1
        %s711 = scalar_select %p710, %s36, 1
        %s712 = smul.addr %s711, 4
        %s713 = smul.addr %s712, 8
        %s714 = scalar_lea.vmem %s3, %s713
        %p715 = scmp.lt.s32.totalorder %s36, 1
        %s716 = scalar_select %p715, %s36, 1
        %s717 = scalar_lea.vmem %s4, %s716
        %p718 = scmp.lt.s32.totalorder %s36, 1
        %s719 = scalar_select %p718, %s36, 1
        %s720 = smul.addr %s719, 4
        %s721 = smul.addr %s720, 8
        %s722 = scalar_lea.vmem %s5, %s721
        %p723 = scmp.lt.s32.totalorder %s36, 1
        %s724 = scalar_select %p723, %s36, 1
        %s725 = scalar_lea.vmem %s6, %s724
        %p726 = scmp.lt.s32.totalorder %s36, 1
        %s727 = scalar_select %p726, %s36, 1
        %s728 = scalar_lea.vmem %s7, %s727
        %p729 = scmp.lt.s32.totalorder %s36, 1
        %s730 = scalar_select %p729, %s36, 1
        %s731 = scalar_lea.vmem %s8, %s730
        %p732 = scmp.lt.s32.totalorder %s36, 1
        %s733 = scalar_select %p732, %s36, 1
        %s734 = smul.addr %s733, 4
        %s735 = smul.addr %s734, 8
        %s736 = scalar_lea.vmem %s9, %s735
        %p737 = scmp.lt.s32.totalorder %s36, 1
        %s738 = scalar_select %p737, %s36, 1
        %s739 = scalar_lea.vmem %s10, %s738
        %p740 = scmp.lt.s32.totalorder %s36, 1
        %s741 = scalar_select %p740, %s36, 1
        %s742 = smul.addr %s741, 8
        %s743 = smul.addr %s742, 8
        %s744 = scalar_lea.vmem %s11, %s743
        %p745 = scmp.lt.s32.totalorder %s36, 1
        %s746 = scalar_select %p745, %s36, 1
        %s747 = scalar_lea.vmem %s12, %s746
        %p748 = scmp.eq.s32.totalorder %s36, 0
        // Predicated region
        $region89: #{_lambda_.1} parent=87 // pred_check
          %p749 = pneg %p748
        $region90: #{_lambda_.1} parent=87 // pred_check_branch
          %751 = sbr.rel (%p749) target = $region92
        $region91: #{_lambda_.1} parent=87 // pred_region
          %v752 = vld [vmem:[%s703] sm:$0xff]
          %vm753 = vcmask 261120
          %754 = vst.msk [vmem:[#allocation2] sm:$0xff] %vm753, %v752
        $region92: #{_lambda_.1} parent=87 // pred_fallthru
          _
        %v755 = vld [vmem:[#allocation2] sm:$0xff]
        %v756 = vld [vmem:[%s706] sm:$0x1]
        %v757 = vld [vmem:[%s709] sm:$0x1]
        %vm758 = vcmask 261120
        %v759 = vsel %vm758, %v755, 0.0
        %760 = vadd.xlane.f32.xlu0 %v759
        %v761 = vpop.xlane.xlu0 %760
        %v762 = vrcp.pop 32.0
        %v763 = vmul.f32 %v761, %v762
        %v764 = vsub.f32 %v755, %v763
        %v765 = vmul.f32 %v764, %v764
        %v766 = vsel %vm758, %v765, 0.0
        %767 = vadd.xlane.f32.xlu0 %v766
        %v768 = vpop.xlane.xlu0 %767
        %v769 = vmul.f32 %v768, %v762
        %v770 = vadd.f32 %v769, 1e-05
        %v771 = vrsqrt.pop %v770
        %v772 = vmul.f32 %v764, %v771
        %v774 = vlaneseq
        %v775 = vshrl.u32 %v774, 7
        %v776 = vsub.s32 0, %v775
        %v777 = vrot.slane %v756, %v776
        %v779 = vmul.f32 %v772, %v777
        %v781 = vlaneseq
        %v782 = vshrl.u32 %v781, 7
        %v783 = vsub.s32 0, %v782
        %v784 = vrot.slane %v757, %v783
        %v786 = vadd.f32 %v779, %v784
        %v787 = vld [vmem:[%s714] sm:$0xff]
        %v788 = vld [vmem:[%s714 + $0x8] sm:$0xff]
        %v789 = vld [vmem:[%s714 + $0x10] sm:$0xff]
        %v790 = vld [vmem:[%s714 + $0x18] sm:$0xff]
        %v791 = vld [vmem:[%s717] sm:$0x1]
        %v793 = vlaneseq
        %v794 = vshrl.u32 %v793, 7
        %v795 = vsub.s32 0, %v794
        %v796 = vrot.slane %v791, %v795
        %v799 = vsel %vm758, %v786, 0
        %801 = vmatprep.subr.mxu0 0.0
        %802 = vmatpush1.msra.mxu0 %v787
        %803 = vmatprep.subr.mxu0 0.0
        %804 = vmatpush1.msra.mxu0 %v788
        %805 = vmatprep.subr.mxu0 0.0
        %806 = vmatpush1.msra.mxu0 %v789
        %807 = vmatprep.subr.mxu0 0.0
        %808 = vmatpush1.msra.mxu0 %v790
        %809 = vmatprep.subr.mxu0 0.0
        %810 = vmatpush1.msra.mxu0 0.0
        %811 = vmatprep.subr.mxu0 0.0
        %812 = vmatpush1.msra.mxu0 0.0
        %813 = vmatprep.subr.mxu0 0.0
        %814 = vmatpush1.msra.mxu0 0.0
        %815 = vmatprep.subr.mxu0 0.0
        %816 = vmatpush1.msra.mxu0 0.0
        %817 = vmatprep.subr.mxu0 0.0
        %818 = vmatpush1.msra.mxu0 0.0
        %819 = vmatprep.subr.mxu0 0.0
        %820 = vmatpush1.msra.mxu0 0.0
        %821 = vmatprep.subr.mxu0 0.0
        %822 = vmatpush1.msra.mxu0 0.0
        %823 = vmatprep.subr.mxu0 0.0
        %824 = vmatpush1.msra.mxu0 0.0
        %825 = vmatprep.subr.mxu0 0.0
        %826 = vmatpush1.msra.mxu0 0.0
        %827 = vmatprep.subr.mxu0 0.0
        %828 = vmatpush1.msra.mxu0 0.0
        %829 = vmatprep.subr.mxu0 0.0
        %830 = vmatpush1.msra.mxu0 0.0
        %831 = vmatprep.subr.mxu0 0.0
        %832 = vmatpush1.msra.mxu0 0.0
        %833 = vmatprep.subr.mxu0 0.0
        %834 = vmatpush1.msra.mxu0 0.0
        %835 = vmatprep.subr.mxu0 0.0
        %836 = vmatpush1.msra.mxu0 0.0
        %837 = vmatprep.subr.mxu0 0.0
        %838 = vmatpush1.msra.mxu0 0.0
        %839 = vmatprep.subr.mxu0 0.0
        %840 = vmatpush1.msra.mxu0 0.0
        %841 = vmatprep.subr.mxu0 0.0
        %842 = vmatpush1.msra.mxu0 0.0
        %843 = vmatprep.subr.mxu0 0.0
        %844 = vmatpush1.msra.mxu0 0.0
        %845 = vmatprep.subr.mxu0 0.0
        %846 = vmatpush1.msra.mxu0 0.0
        %847 = vmatprep.subr.mxu0 0.0
        %848 = vmatpush1.msra.mxu0 0.0
        %849 = vmatprep.subr.mxu0 0.0
        %850 = vmatpush1.msra.mxu0 0.0
        %851 = vmatprep.subr.mxu0 0.0
        %852 = vmatpush1.msra.mxu0 0.0
        %853 = vmatprep.subr.mxu0 0.0
        %854 = vmatpush1.msra.mxu0 0.0
        %855 = vmatprep.subr.mxu0 0.0
        %856 = vmatpush1.msra.mxu0 0.0
        %857 = vmatprep.subr.mxu0 0.0
        %858 = vmatpush1.msra.mxu0 0.0
        %859 = vmatprep.subr.mxu0 0.0
        %860 = vmatpush1.msra.mxu0 0.0
        %861 = vmatprep.subr.mxu0 0.0
        %862 = vmatpush1.msra.mxu0 0.0
        %863 = vmatprep.subr.mxu0 0.0
        %864 = vmatpush1.msra.mxu0 0.0
        %865 = vmatprep.mubr.f32.mxu0 0.0
        %866 = vmatmul.mubr.f32.gmra.mrb[0].mxu0 %v799
        %v867 = vpop.f32.mrb[0].mxu0
        %v868 = vadd.f32 %v796, %v867
        %v869 = vpop.f32.mrb[0].mxu0
        %870 = vdwg.mxu0
        %v871 = vlaneseq
        %v872 = vshrl.u32 %v871, 7
        %v873 = vadd.s32 %v872, 8
        %v874 = vadd.s32 %v872, 16
        %v875 = vadd.s32 %v872, 24
        %v876 = vlaneseq
        %v877 = vand.u32 %v876, 127
        %v878 = vadd.s32 %v872, 1
        %v879 = vadd.s32 %v873, 1
        %v880 = vadd.s32 %v874, 1
        %v881 = vadd.s32 %v875, 1
        %v882 = vand.u32 %v872, 1
        %v883 = vand.u32 %v873, 1
        %v884 = vand.u32 %v874, 1
        %v885 = vand.u32 %v875, 1
        %v886 = vmul.u32 %v882, 2
        %v887 = vmul.u32 %v883, 2
        %v888 = vmul.u32 %v884, 2
        %v889 = vmul.u32 %v885, 2
        %v890 = vsub.s32 %v878, %v886
        %v891 = vsub.s32 %v879, %v887
        %v892 = vsub.s32 %v880, %v888
        %v893 = vsub.s32 %v881, %v889
        %vm894 = vcmp.eq.s32.totalorder %v877, %v890
        %vm895 = vcmp.eq.s32.totalorder %v877, %v891
        %vm896 = vcmp.eq.s32.totalorder %v877, %v892
        %vm897 = vcmp.eq.s32.totalorder %v877, %v893
        %v898 = vsel %vm894, 1, 0
        %v899 = vsel %vm895, 1, 0
        %v900 = vsel %vm896, 1, 0
        %v901 = vsel %vm897, 1, 0
        %v902 = vcvt.s32.f32 %v898
        %v903 = vcvt.s32.f32 %v899
        %v904 = vcvt.s32.f32 %v900
        %v905 = vcvt.s32.f32 %v901
        %v906 = vld [vmem:[%s13] sm:$0xff]
        %v907 = vld [vmem:[%s14] sm:$0xff]
        %v909 = vsel %vm758, %v868, 0
        %911 = vmatprep.subr.mxu0 0.0
        %912 = vmatpush1.msra.mxu0 %v902
        %913 = vmatprep.subr.mxu0 0.0
        %914 = vmatpush1.msra.mxu0 %v903
        %915 = vmatprep.subr.mxu0 0.0
        %916 = vmatpush1.msra.mxu0 %v904
        %917 = vmatprep.subr.mxu0 0.0
        %918 = vmatpush1.msra.mxu0 %v905
        %919 = vmatprep.subr.mxu0 0.0
        %920 = vmatpush1.msra.mxu0 0.0
        %921 = vmatprep.subr.mxu0 0.0
        %922 = vmatpush1.msra.mxu0 0.0
        %923 = vmatprep.subr.mxu0 0.0
        %924 = vmatpush1.msra.mxu0 0.0
        %925 = vmatprep.subr.mxu0 0.0
        %926 = vmatpush1.msra.mxu0 0.0
        %927 = vmatprep.subr.mxu0 0.0
        %928 = vmatpush1.msra.mxu0 0.0
        %929 = vmatprep.subr.mxu0 0.0
        %930 = vmatpush1.msra.mxu0 0.0
        %931 = vmatprep.subr.mxu0 0.0
        %932 = vmatpush1.msra.mxu0 0.0
        %933 = vmatprep.subr.mxu0 0.0
        %934 = vmatpush1.msra.mxu0 0.0
        %935 = vmatprep.subr.mxu0 0.0
        %936 = vmatpush1.msra.mxu0 0.0
        %937 = vmatprep.subr.mxu0 0.0
        %938 = vmatpush1.msra.mxu0 0.0
        %939 = vmatprep.subr.mxu0 0.0
        %940 = vmatpush1.msra.mxu0 0.0
        %941 = vmatprep.subr.mxu0 0.0
        %942 = vmatpush1.msra.mxu0 0.0
        %943 = vmatprep.subr.mxu0 0.0
        %944 = vmatpush1.msra.mxu0 0.0
        %945 = vmatprep.subr.mxu0 0.0
        %946 = vmatpush1.msra.mxu0 0.0
        %947 = vmatprep.subr.mxu0 0.0
        %948 = vmatpush1.msra.mxu0 0.0
        %949 = vmatprep.subr.mxu0 0.0
        %950 = vmatpush1.msra.mxu0 0.0
        %951 = vmatprep.subr.mxu0 0.0
        %952 = vmatpush1.msra.mxu0 0.0
        %953 = vmatprep.subr.mxu0 0.0
        %954 = vmatpush1.msra.mxu0 0.0
        %955 = vmatprep.subr.mxu0 0.0
        %956 = vmatpush1.msra.mxu0 0.0
        %957 = vmatprep.subr.mxu0 0.0
        %958 = vmatpush1.msra.mxu0 0.0
        %959 = vmatprep.subr.mxu0 0.0
        %960 = vmatpush1.msra.mxu0 0.0
        %961 = vmatprep.subr.mxu0 0.0
        %962 = vmatpush1.msra.mxu0 0.0
        %963 = vmatprep.subr.mxu0 0.0
        %964 = vmatpush1.msra.mxu0 0.0
        %965 = vmatprep.subr.mxu0 0.0
        %966 = vmatpush1.msra.mxu0 0.0
        %967 = vmatprep.subr.mxu0 0.0
        %968 = vmatpush1.msra.mxu0 0.0
        %969 = vmatprep.subr.mxu0 0.0
        %970 = vmatpush1.msra.mxu0 0.0
        %971 = vmatprep.subr.mxu0 0.0
        %972 = vmatpush1.msra.mxu0 0.0
        %973 = vmatprep.subr.mxu0 0.0
        %974 = vmatpush1.msra.mxu0 0.0
        %975 = vmatprep.mubr.f32.mxu0 0.0
        %976 = vmatmul.mubr.f32.gmra.mrb[0].mxu0 %v909
        %v977 = vpop.f32.mrb[0].mxu0
        %v978 = vadd.f32 0.0, %v977
        %v979 = vpop.f32.mrb[0].mxu0
        %980 = vdwg.mxu0
        %v981 = vmul.f32 %v868, %v906
        %v982 = vmul.f32 %v978, %v907
        %v983 = vadd.f32 %v981, %v982
        %v984 = vmul.f32 %v983, 0.35355338
        %985 = vrot.lane.b32.xlu0 %v868, 96
        %v986 = vpop.permute.xlu0 %985
        %v987 = vsel %vm758, %v986, 0
        %989 = vmatprep.subr.mxu0 0.0
        %990 = vmatpush1.msra.mxu0 %v902
        %991 = vmatprep.subr.mxu0 0.0
        %992 = vmatpush1.msra.mxu0 %v903
        %993 = vmatprep.subr.mxu0 0.0
        %994 = vmatpush1.msra.mxu0 %v904
        %995 = vmatprep.subr.mxu0 0.0
        %996 = vmatpush1.msra.mxu0 %v905
        %997 = vmatprep.subr.mxu0 0.0
        %998 = vmatpush1.msra.mxu0 0.0
        %999 = vmatprep.subr.mxu0 0.0
        %1000 = vmatpush1.msra.mxu0 0.0
        %1001 = vmatprep.subr.mxu0 0.0
        %1002 = vmatpush1.msra.mxu0 0.0
        %1003 = vmatprep.subr.mxu0 0.0
        %1004 = vmatpush1.msra.mxu0 0.0
        %1005 = vmatprep.subr.mxu0 0.0
        %1006 = vmatpush1.msra.mxu0 0.0
        %1007 = vmatprep.subr.mxu0 0.0
        %1008 = vmatpush1.msra.mxu0 0.0
        %1009 = vmatprep.subr.mxu0 0.0
        %1010 = vmatpush1.msra.mxu0 0.0
        %1011 = vmatprep.subr.mxu0 0.0
        %1012 = vmatpush1.msra.mxu0 0.0
        %1013 = vmatprep.subr.mxu0 0.0
        %1014 = vmatpush1.msra.mxu0 0.0
        %1015 = vmatprep.subr.mxu0 0.0
        %1016 = vmatpush1.msra.mxu0 0.0
        %1017 = vmatprep.subr.mxu0 0.0
        %1018 = vmatpush1.msra.mxu0 0.0
        %1019 = vmatprep.subr.mxu0 0.0
        %1020 = vmatpush1.msra.mxu0 0.0
        %1021 = vmatprep.subr.mxu0 0.0
        %1022 = vmatpush1.msra.mxu0 0.0
        %1023 = vmatprep.subr.mxu0 0.0
        %1024 = vmatpush1.msra.mxu0 0.0
        %1025 = vmatprep.subr.mxu0 0.0
        %1026 = vmatpush1.msra.mxu0 0.0
        %1027 = vmatprep.subr.mxu0 0.0
        %1028 = vmatpush1.msra.mxu0 0.0
        %1029 = vmatprep.subr.mxu0 0.0
        %1030 = vmatpush1.msra.mxu0 0.0
        %1031 = vmatprep.subr.mxu0 0.0
        %1032 = vmatpush1.msra.mxu0 0.0
        %1033 = vmatprep.subr.mxu0 0.0
        %1034 = vmatpush1.msra.mxu0 0.0
        %1035 = vmatprep.subr.mxu0 0.0
        %1036 = vmatpush1.msra.mxu0 0.0
        %1037 = vmatprep.subr.mxu0 0.0
        %1038 = vmatpush1.msra.mxu0 0.0
        %1039 = vmatprep.subr.mxu0 0.0
        %1040 = vmatpush1.msra.mxu0 0.0
        %1041 = vmatprep.subr.mxu0 0.0
        %1042 = vmatpush1.msra.mxu0 0.0
        %1043 = vmatprep.subr.mxu0 0.0
        %1044 = vmatpush1.msra.mxu0 0.0
        %1045 = vmatprep.subr.mxu0 0.0
        %1046 = vmatpush1.msra.mxu0 0.0
        %1047 = vmatprep.subr.mxu0 0.0
        %1048 = vmatpush1.msra.mxu0 0.0
        %1049 = vmatprep.subr.mxu0 0.0
        %1050 = vmatpush1.msra.mxu0 0.0
        %1051 = vmatprep.subr.mxu0 0.0
        %1052 = vmatpush1.msra.mxu0 0.0
        %1053 = vmatprep.mubr.f32.mxu0 0.0
        %1054 = vmatmul.mubr.f32.gmra.mrb[0].mxu0 %v987
        %v1055 = vpop.f32.mrb[0].mxu0
        %v1056 = vadd.f32 0.0, %v1055
        %v1057 = vpop.f32.mrb[0].mxu0
        %1058 = vdwg.mxu0
        %1060 = vrot.lane.b32.xlu0 %v906, 32
        %v1061 = vpop.permute.xlu0 %1060
        %v1063 = vmul.f32 %v868, %v1061
        %v1064 = vmul.f32 %v1056, %v907
        %1066 = vrot.lane.b32.xlu0 %v1064, 32
        %v1067 = vpop.permute.xlu0 %1066
        %v1069 = vadd.f32 %v1063, %v1067
        %vm1070 = vcmp.le.s32.totalorder %v877, %v872
        %v1071 = vld [vmem:[%s722] sm:$0xff]
        %v1072 = vld [vmem:[%s722 + $0x8] sm:$0xff]
        %v1073 = vld [vmem:[%s722 + $0x10] sm:$0xff]
        %v1074 = vld [vmem:[%s722 + $0x18] sm:$0xff]
        %1076 = vrot.lane.b32.xlu0 %v1069, 96
        %v1077 = vpop.permute.xlu0 %1076
        %vm1078 = vcmask 64512
        %v1080 = vsel %vm1078, %v984, 0
        %v1082 = vsel %vm1078, %v1077, 0
        %1084 = vmatprep.subr.mxu0 0.0
        %1085 = vmatpush1.xpose.msra.mxu0 %v1082
        %1086 = vmatprep.subr.mxu0 0.0
        %1087 = vmatpush1.xpose.msra.mxu0 0.0
        %1088 = vmatprep.subr.mxu0 0.0
        %1089 = vmatpush1.xpose.msra.mxu0 0.0
        %1090 = vmatprep.subr.mxu0 0.0
        %1091 = vmatpush1.xpose.msra.mxu0 0.0
        %1092 = vmatprep.subr.mxu0 0.0
        %1093 = vmatpush1.xpose.msra.mxu0 0.0
        %1094 = vmatprep.subr.mxu0 0.0
        %1095 = vmatpush1.xpose.msra.mxu0 0.0
        %1096 = vmatprep.subr.mxu0 0.0
        %1097 = vmatpush1.xpose.msra.mxu0 0.0
        %1098 = vmatprep.subr.mxu0 0.0
        %1099 = vmatpush1.xpose.msra.mxu0 0.0
        %1100 = vmatprep.subr.mxu0 0.0
        %1101 = vmatpush1.xpose.msra.mxu0 0.0
        %1102 = vmatprep.subr.mxu0 0.0
        %1103 = vmatpush1.xpose.msra.mxu0 0.0
        %1104 = vmatprep.subr.mxu0 0.0
        %1105 = vmatpush1.xpose.msra.mxu0 0.0
        %1106 = vmatprep.subr.mxu0 0.0
        %1107 = vmatpush1.xpose.msra.mxu0 0.0
        %1108 = vmatprep.subr.mxu0 0.0
        %1109 = vmatpush1.xpose.msra.mxu0 0.0
        %1110 = vmatprep.subr.mxu0 0.0
        %1111 = vmatpush1.xpose.msra.mxu0 0.0
        %1112 = vmatprep.subr.mxu0 0.0
        %1113 = vmatpush1.xpose.msra.mxu0 0.0
        %1114 = vmatprep.subr.mxu0 0.0
        %1115 = vmatpush1.xpose.msra.mxu0 0.0
        %1116 = vmatprep.subr.mxu0 0.0
        %1117 = vmatpush1.xpose.msra.mxu0 0.0
        %1118 = vmatprep.subr.mxu0 0.0
        %1119 = vmatpush1.xpose.msra.mxu0 0.0
        %1120 = vmatprep.subr.mxu0 0.0
        %1121 = vmatpush1.xpose.msra.mxu0 0.0
        %1122 = vmatprep.subr.mxu0 0.0
        %1123 = vmatpush1.xpose.msra.mxu0 0.0
        %1124 = vmatprep.subr.mxu0 0.0
        %1125 = vmatpush1.xpose.msra.mxu0 0.0
        %1126 = vmatprep.subr.mxu0 0.0
        %1127 = vmatpush1.xpose.msra.mxu0 0.0
        %1128 = vmatprep.subr.mxu0 0.0
        %1129 = vmatpush1.xpose.msra.mxu0 0.0
        %1130 = vmatprep.subr.mxu0 0.0
        %1131 = vmatpush1.xpose.msra.mxu0 0.0
        %1132 = vmatprep.subr.mxu0 0.0
        %1133 = vmatpush1.xpose.msra.mxu0 0.0
        %1134 = vmatprep.subr.mxu0 0.0
        %1135 = vmatpush1.xpose.msra.mxu0 0.0
        %1136 = vmatprep.subr.mxu0 0.0
        %1137 = vmatpush1.xpose.msra.mxu0 0.0
        %1138 = vmatprep.subr.mxu0 0.0
        %1139 = vmatpush1.xpose.msra.mxu0 0.0
        %1140 = vmatprep.subr.mxu0 0.0
        %1141 = vmatpush1.xpose.msra.mxu0 0.0
        %1142 = vmatprep.subr.mxu0 0.0
        %1143 = vmatpush1.xpose.msra.mxu0 0.0
        %1144 = vmatprep.subr.mxu0 0.0
        %1145 = vmatpush1.xpose.msra.mxu0 0.0
        %1146 = vmatprep.subr.mxu0 0.0
        %1147 = vmatpush1.xpose.msra.mxu0 0.0
        %1148 = vmatprep.mubr.f32.mxu0 0.0
        %1149 = vmatmul.mubr.f32.gmra.mrb[0].mxu0 %v1080
        %v1150 = vpop.f32.mrb[0].mxu0
        %v1151 = vadd.f32 0.0, %v1150
        %v1152 = vpop.f32.mrb[0].mxu0
        %1153 = vdwg.mxu0
        %v1154 = vsel %vm1070, %v1151, -1e+30
        %v1155 = vsel %vm1078, %v1154, -inf
        %1156 = vmax.xlane.f32.xlu0 %v1155
        %v1157 = vpop.xlane.xlu0 %1156
        %v1158 = vsub.f32 %v1154, %v1157
        %v1159 = vmul.f32 %v1158, 1.442695
        %v1160 = vpow.pop %v1159
        %v1161 = vsel %vm1078, %v1160, 0.0
        %1162 = vadd.xlane.f32.xlu0 %v1161
        %v1163 = vpop.xlane.xlu0 %1162
        %1164 = vrot.lane.b32.xlu0 %v868, 64
        %v1165 = vpop.permute.xlu0 %1164
        %v1168 = vsel %vm1078, %v1160, 0
        %1170 = vmatprep.subr.mxu0 0.0
        %1171 = vmatpush1.msra.mxu0 %v1165
        %1172 = vmatprep.subr.mxu0 0.0
        %1173 = vmatpush1.msra.mxu0 0.0
        %1174 = vmatprep.subr.mxu0 0.0
        %1175 = vmatpush1.msra.mxu0 0.0
        %1176 = vmatprep.subr.mxu0 0.0
        %1177 = vmatpush1.msra.mxu0 0.0
        %1178 = vmatprep.subr.mxu0 0.0
        %1179 = vmatpush1.msra.mxu0 0.0
        %1180 = vmatprep.subr.mxu0 0.0
        %1181 = vmatpush1.msra.mxu0 0.0
        %1182 = vmatprep.subr.mxu0 0.0
        %1183 = vmatpush1.msra.mxu0 0.0
        %1184 = vmatprep.subr.mxu0 0.0
        %1185 = vmatpush1.msra.mxu0 0.0
        %1186 = vmatprep.subr.mxu0 0.0
        %1187 = vmatpush1.msra.mxu0 0.0
        %1188 = vmatprep.subr.mxu0 0.0
        %1189 = vmatpush1.msra.mxu0 0.0
        %1190 = vmatprep.subr.mxu0 0.0
        %1191 = vmatpush1.msra.mxu0 0.0
        %1192 = vmatprep.subr.mxu0 0.0
        %1193 = vmatpush1.msra.mxu0 0.0
        %1194 = vmatprep.subr.mxu0 0.0
        %1195 = vmatpush1.msra.mxu0 0.0
        %1196 = vmatprep.subr.mxu0 0.0
        %1197 = vmatpush1.msra.mxu0 0.0
        %1198 = vmatprep.subr.mxu0 0.0
        %1199 = vmatpush1.msra.mxu0 0.0
        %1200 = vmatprep.subr.mxu0 0.0
        %1201 = vmatpush1.msra.mxu0 0.0
        %1202 = vmatprep.subr.mxu0 0.0
        %1203 = vmatpush1.msra.mxu0 0.0
        %1204 = vmatprep.subr.mxu0 0.0
        %1205 = vmatpush1.msra.mxu0 0.0
        %1206 = vmatprep.subr.mxu0 0.0
        %1207 = vmatpush1.msra.mxu0 0.0
        %1208 = vmatprep.subr.mxu0 0.0
        %1209 = vmatpush1.msra.mxu0 0.0
        %1210 = vmatprep.subr.mxu0 0.0
        %1211 = vmatpush1.msra.mxu0 0.0
        %1212 = vmatprep.subr.mxu0 0.0
        %1213 = vmatpush1.msra.mxu0 0.0
        %1214 = vmatprep.subr.mxu0 0.0
        %1215 = vmatpush1.msra.mxu0 0.0
        %1216 = vmatprep.subr.mxu0 0.0
        %1217 = vmatpush1.msra.mxu0 0.0
        %1218 = vmatprep.subr.mxu0 0.0
        %1219 = vmatpush1.msra.mxu0 0.0
        %1220 = vmatprep.subr.mxu0 0.0
        %1221 = vmatpush1.msra.mxu0 0.0
        %1222 = vmatprep.subr.mxu0 0.0
        %1223 = vmatpush1.msra.mxu0 0.0
        %1224 = vmatprep.subr.mxu0 0.0
        %1225 = vmatpush1.msra.mxu0 0.0
        %1226 = vmatprep.subr.mxu0 0.0
        %1227 = vmatpush1.msra.mxu0 0.0
        %1228 = vmatprep.subr.mxu0 0.0
        %1229 = vmatpush1.msra.mxu0 0.0
        %1230 = vmatprep.subr.mxu0 0.0
        %1231 = vmatpush1.msra.mxu0 0.0
        %1232 = vmatprep.subr.mxu0 0.0
        %1233 = vmatpush1.msra.mxu0 0.0
        %1234 = vmatprep.mubr.f32.mxu0 0.0
        %1235 = vmatmul.mubr.f32.gmra.mrb[0].mxu0 %v1168
        %v1236 = vpop.f32.mrb[0].mxu0
        %v1237 = vadd.f32 0.0, %v1236
        %v1238 = vpop.f32.mrb[0].mxu0
        %1239 = vdwg.mxu0
        %v1240 = vrcp.pop %v1163
        %v1241 = vmul.f32 %v1237, %v1240
        %1242 = vrot.lane.b32.xlu0 %v984, 120
        %v1243 = vpop.permute.xlu0 %1242
        %1244 = vrot.lane.b32.xlu0 %v1069, 88
        %v1245 = vpop.permute.xlu0 %1244
        %v1246 = vsel %vm1078, %v1243, 0
        %v1248 = vsel %vm1078, %v1245, 0
        %1250 = vmatprep.subr.mxu0 0.0
        %1251 = vmatpush1.xpose.msra.mxu0 %v1248
        %1252 = vmatprep.subr.mxu0 0.0
        %1253 = vmatpush1.xpose.msra.mxu0 0.0
        %1254 = vmatprep.subr.mxu0 0.0
        %1255 = vmatpush1.xpose.msra.mxu0 0.0
        %1256 = vmatprep.subr.mxu0 0.0
        %1257 = vmatpush1.xpose.msra.mxu0 0.0
        %1258 = vmatprep.subr.mxu0 0.0
        %1259 = vmatpush1.xpose.msra.mxu0 0.0
        %1260 = vmatprep.subr.mxu0 0.0
        %1261 = vmatpush1.xpose.msra.mxu0 0.0
        %1262 = vmatprep.subr.mxu0 0.0
        %1263 = vmatpush1.xpose.msra.mxu0 0.0
        %1264 = vmatprep.subr.mxu0 0.0
        %1265 = vmatpush1.xpose.msra.mxu0 0.0
        %1266 = vmatprep.subr.mxu0 0.0
        %1267 = vmatpush1.xpose.msra.mxu0 0.0
        %1268 = vmatprep.subr.mxu0 0.0
        %1269 = vmatpush1.xpose.msra.mxu0 0.0
        %1270 = vmatprep.subr.mxu0 0.0
        %1271 = vmatpush1.xpose.msra.mxu0 0.0
        %1272 = vmatprep.subr.mxu0 0.0
        %1273 = vmatpush1.xpose.msra.mxu0 0.0
        %1274 = vmatprep.subr.mxu0 0.0
        %1275 = vmatpush1.xpose.msra.mxu0 0.0
        %1276 = vmatprep.subr.mxu0 0.0
        %1277 = vmatpush1.xpose.msra.mxu0 0.0
        %1278 = vmatprep.subr.mxu0 0.0
        %1279 = vmatpush1.xpose.msra.mxu0 0.0
        %1280 = vmatprep.subr.mxu0 0.0
        %1281 = vmatpush1.xpose.msra.mxu0 0.0
        %1282 = vmatprep.subr.mxu0 0.0
        %1283 = vmatpush1.xpose.msra.mxu0 0.0
        %1284 = vmatprep.subr.mxu0 0.0
        %1285 = vmatpush1.xpose.msra.mxu0 0.0
        %1286 = vmatprep.subr.mxu0 0.0
        %1287 = vmatpush1.xpose.msra.mxu0 0.0
        %1288 = vmatprep.subr.mxu0 0.0
        %1289 = vmatpush1.xpose.msra.mxu0 0.0
        %1290 = vmatprep.subr.mxu0 0.0
        %1291 = vmatpush1.xpose.msra.mxu0 0.0
        %1292 = vmatprep.subr.mxu0 0.0
        %1293 = vmatpush1.xpose.msra.mxu0 0.0
        %1294 = vmatprep.subr.mxu0 0.0
        %1295 = vmatpush1.xpose.msra.mxu0 0.0
        %1296 = vmatprep.subr.mxu0 0.0
        %1297 = vmatpush1.xpose.msra.mxu0 0.0
        %1298 = vmatprep.subr.mxu0 0.0
        %1299 = vmatpush1.xpose.msra.mxu0 0.0
        %1300 = vmatprep.subr.mxu0 0.0
        %1301 = vmatpush1.xpose.msra.mxu0 0.0
        %1302 = vmatprep.subr.mxu0 0.0
        %1303 = vmatpush1.xpose.msra.mxu0 0.0
        %1304 = vmatprep.subr.mxu0 0.0
        %1305 = vmatpush1.xpose.msra.mxu0 0.0
        %1306 = vmatprep.subr.mxu0 0.0
        %1307 = vmatpush1.xpose.msra.mxu0 0.0
        %1308 = vmatprep.subr.mxu0 0.0
        %1309 = vmatpush1.xpose.msra.mxu0 0.0
        %1310 = vmatprep.subr.mxu0 0.0
        %1311 = vmatpush1.xpose.msra.mxu0 0.0
        %1312 = vmatprep.subr.mxu0 0.0
        %1313 = vmatpush1.xpose.msra.mxu0 0.0
        %1314 = vmatprep.mubr.f32.mxu0 0.0
        %1315 = vmatmul.mubr.f32.gmra.mrb[0].mxu0 %v1246
        %v1316 = vpop.f32.mrb[0].mxu0
        %v1317 = vadd.f32 0.0, %v1316
        %v1318 = vpop.f32.mrb[0].mxu0
        %1319 = vdwg.mxu0
        %v1320 = vsel %vm1070, %v1317, -1e+30
        %v1321 = vsel %vm1078, %v1320, -inf
        %1322 = vmax.xlane.f32.xlu0 %v1321
        %v1323 = vpop.xlane.xlu0 %1322
        %v1324 = vsub.f32 %v1320, %v1323
        %v1325 = vmul.f32 %v1324, 1.442695
        %v1326 = vpow.pop %v1325
        %v1327 = vsel %vm1078, %v1326, 0.0
        %1328 = vadd.xlane.f32.xlu0 %v1327
        %v1329 = vpop.xlane.xlu0 %1328
        %1330 = vrot.lane.b32.xlu0 %v868, 56
        %v1331 = vpop.permute.xlu0 %1330
        %v1334 = vsel %vm1078, %v1326, 0
        %1336 = vmatprep.subr.mxu0 0.0
        %1337 = vmatpush1.msra.mxu0 %v1331
        %1338 = vmatprep.subr.mxu0 0.0
        %1339 = vmatpush1.msra.mxu0 0.0
        %1340 = vmatprep.subr.mxu0 0.0
        %1341 = vmatpush1.msra.mxu0 0.0
        %1342 = vmatprep.subr.mxu0 0.0
        %1343 = vmatpush1.msra.mxu0 0.0
        %1344 = vmatprep.subr.mxu0 0.0
        %1345 = vmatpush1.msra.mxu0 0.0
        %1346 = vmatprep.subr.mxu0 0.0
        %1347 = vmatpush1.msra.mxu0 0.0
        %1348 = vmatprep.subr.mxu0 0.0
        %1349 = vmatpush1.msra.mxu0 0.0
        %1350 = vmatprep.subr.mxu0 0.0
        %1351 = vmatpush1.msra.mxu0 0.0
        %1352 = vmatprep.subr.mxu0 0.0
        %1353 = vmatpush1.msra.mxu0 0.0
        %1354 = vmatprep.subr.mxu0 0.0
        %1355 = vmatpush1.msra.mxu0 0.0
        %1356 = vmatprep.subr.mxu0 0.0
        %1357 = vmatpush1.msra.mxu0 0.0
        %1358 = vmatprep.subr.mxu0 0.0
        %1359 = vmatpush1.msra.mxu0 0.0
        %1360 = vmatprep.subr.mxu0 0.0
        %1361 = vmatpush1.msra.mxu0 0.0
        %1362 = vmatprep.subr.mxu0 0.0
        %1363 = vmatpush1.msra.mxu0 0.0
        %1364 = vmatprep.subr.mxu0 0.0
        %1365 = vmatpush1.msra.mxu0 0.0
        %1366 = vmatprep.subr.mxu0 0.0
        %1367 = vmatpush1.msra.mxu0 0.0
        %1368 = vmatprep.subr.mxu0 0.0
        %1369 = vmatpush1.msra.mxu0 0.0
        %1370 = vmatprep.subr.mxu0 0.0
        %1371 = vmatpush1.msra.mxu0 0.0
        %1372 = vmatprep.subr.mxu0 0.0
        %1373 = vmatpush1.msra.mxu0 0.0
        %1374 = vmatprep.subr.mxu0 0.0
        %1375 = vmatpush1.msra.mxu0 0.0
        %1376 = vmatprep.subr.mxu0 0.0
        %1377 = vmatpush1.msra.mxu0 0.0
        %1378 = vmatprep.subr.mxu0 0.0
        %1379 = vmatpush1.msra.mxu0 0.0
        %1380 = vmatprep.subr.mxu0 0.0
        %1381 = vmatpush1.msra.mxu0 0.0
        %1382 = vmatprep.subr.mxu0 0.0
        %1383 = vmatpush1.msra.mxu0 0.0
        %1384 = vmatprep.subr.mxu0 0.0
        %1385 = vmatpush1.msra.mxu0 0.0
        %1386 = vmatprep.subr.mxu0 0.0
        %1387 = vmatpush1.msra.mxu0 0.0
        %1388 = vmatprep.subr.mxu0 0.0
        %1389 = vmatpush1.msra.mxu0 0.0
        %1390 = vmatprep.subr.mxu0 0.0
        %1391 = vmatpush1.msra.mxu0 0.0
        %1392 = vmatprep.subr.mxu0 0.0
        %1393 = vmatpush1.msra.mxu0 0.0
        %1394 = vmatprep.subr.mxu0 0.0
        %1395 = vmatpush1.msra.mxu0 0.0
        %1396 = vmatprep.subr.mxu0 0.0
        %1397 = vmatpush1.msra.mxu0 0.0
        %1398 = vmatprep.subr.mxu0 0.0
        %1399 = vmatpush1.msra.mxu0 0.0
        %1400 = vmatprep.mubr.f32.mxu0 0.0
        %1401 = vmatmul.mubr.f32.gmra.mrb[0].mxu0 %v1334
        %v1402 = vpop.f32.mrb[0].mxu0
        %v1403 = vadd.f32 0.0, %v1402
        %v1404 = vpop.f32.mrb[0].mxu0
        %1405 = vdwg.mxu0
        %v1406 = vrcp.pop %v1329
        %v1407 = vmul.f32 %v1403, %v1406
        %v1409 = vsel %vm1078, %v1407, 0
        %1411 = vmatprep.subr.mxu0 0.0
        %1412 = vmatpush1.msra.mxu0 %v1072
        %1413 = vmatprep.subr.mxu0 0.0
        %1414 = vmatpush1.msra.mxu0 0.0
        %1415 = vmatprep.subr.mxu0 0.0
        %1416 = vmatpush1.msra.mxu0 0.0
        %1417 = vmatprep.subr.mxu0 0.0
        %1418 = vmatpush1.msra.mxu0 0.0
        %1419 = vmatprep.subr.mxu0 0.0
        %1420 = vmatpush1.msra.mxu0 0.0
        %1421 = vmatprep.subr.mxu0 0.0
        %1422 = vmatpush1.msra.mxu0 0.0
        %1423 = vmatprep.subr.mxu0 0.0
        %1424 = vmatpush1.msra.mxu0 0.0
        %1425 = vmatprep.subr.mxu0 0.0
        %1426 = vmatpush1.msra.mxu0 0.0
        %1427 = vmatprep.subr.mxu0 0.0
        %1428 = vmatpush1.msra.mxu0 0.0
        %1429 = vmatprep.subr.mxu0 0.0
        %1430 = vmatpush1.msra.mxu0 0.0
        %1431 = vmatprep.subr.mxu0 0.0
        %1432 = vmatpush1.msra.mxu0 0.0
        %1433 = vmatprep.subr.mxu0 0.0
        %1434 = vmatpush1.msra.mxu0 0.0
        %1435 = vmatprep.subr.mxu0 0.0
        %1436 = vmatpush1.msra.mxu0 0.0
        %1437 = vmatprep.subr.mxu0 0.0
        %1438 = vmatpush1.msra.mxu0 0.0
        %1439 = vmatprep.subr.mxu0 0.0
        %1440 = vmatpush1.msra.mxu0 0.0
        %1441 = vmatprep.subr.mxu0 0.0
        %1442 = vmatpush1.msra.mxu0 0.0
        %1443 = vmatprep.subr.mxu0 0.0
        %1444 = vmatpush1.msra.mxu0 0.0
        %1445 = vmatprep.subr.mxu0 0.0
        %1446 = vmatpush1.msra.mxu0 0.0
        %1447 = vmatprep.subr.mxu0 0.0
        %1448 = vmatpush1.msra.mxu0 0.0
        %1449 = vmatprep.subr.mxu0 0.0
        %1450 = vmatpush1.msra.mxu0 0.0
        %1451 = vmatprep.subr.mxu0 0.0
        %1452 = vmatpush1.msra.mxu0 0.0
        %1453 = vmatprep.subr.mxu0 0.0
        %1454 = vmatpush1.msra.mxu0 0.0
        %1455 = vmatprep.subr.mxu0 0.0
        %1456 = vmatpush1.msra.mxu0 0.0
        %1457 = vmatprep.subr.mxu0 0.0
        %1458 = vmatpush1.msra.mxu0 0.0
        %1459 = vmatprep.subr.mxu0 0.0
        %1460 = vmatpush1.msra.mxu0 0.0
        %1461 = vmatprep.subr.mxu0 0.0
        %1462 = vmatpush1.msra.mxu0 0.0
        %1463 = vmatprep.subr.mxu0 0.0
        %1464 = vmatpush1.msra.mxu0 0.0
        %1465 = vmatprep.subr.mxu0 0.0
        %1466 = vmatpush1.msra.mxu0 0.0
        %1467 = vmatprep.subr.mxu0 0.0
        %1468 = vmatpush1.msra.mxu0 0.0
        %1469 = vmatprep.subr.mxu0 0.0
        %1470 = vmatpush1.msra.mxu0 0.0
        %1471 = vmatprep.subr.mxu0 0.0
        %1472 = vmatpush1.msra.mxu0 0.0
        %1473 = vmatprep.subr.mxu0 0.0
        %1474 = vmatpush1.msra.mxu0 0.0
        %1475 = vmatprep.mubr.f32.mxu0 0.0
        %1476 = vmatmul.mubr.f32.gmra.mrb[0].mxu0 %v1409
        %v1477 = vpop.f32.mrb[0].mxu0
        %v1478 = vadd.f32 0.0, %v1477
        %v1479 = vpop.f32.mrb[0].mxu0
        %1480 = vdwg.mxu0
        %v1482 = vsel %vm1078, %v1241, 0
        %1484 = vmatprep.subr.mxu0 0.0
        %1485 = vmatpush1.msra.mxu0 %v1071
        %1486 = vmatprep.subr.mxu0 0.0
        %1487 = vmatpush1.msra.mxu0 0.0
        %1488 = vmatprep.subr.mxu0 0.0
        %1489 = vmatpush1.msra.mxu0 0.0
        %1490 = vmatprep.subr.mxu0 0.0
        %1491 = vmatpush1.msra.mxu0 0.0
        %1492 = vmatprep.subr.mxu0 0.0
        %1493 = vmatpush1.msra.mxu0 0.0
        %1494 = vmatprep.subr.mxu0 0.0
        %1495 = vmatpush1.msra.mxu0 0.0
        %1496 = vmatprep.subr.mxu0 0.0
        %1497 = vmatpush1.msra.mxu0 0.0
        %1498 = vmatprep.subr.mxu0 0.0
        %1499 = vmatpush1.msra.mxu0 0.0
        %1500 = vmatprep.subr.mxu0 0.0
        %1501 = vmatpush1.msra.mxu0 0.0
        %1502 = vmatprep.subr.mxu0 0.0
        %1503 = vmatpush1.msra.mxu0 0.0
        %1504 = vmatprep.subr.mxu0 0.0
        %1505 = vmatpush1.msra.mxu0 0.0
        %1506 = vmatprep.subr.mxu0 0.0
        %1507 = vmatpush1.msra.mxu0 0.0
        %1508 = vmatprep.subr.mxu0 0.0
        %1509 = vmatpush1.msra.mxu0 0.0
        %1510 = vmatprep.subr.mxu0 0.0
        %1511 = vmatpush1.msra.mxu0 0.0
        %1512 = vmatprep.subr.mxu0 0.0
        %1513 = vmatpush1.msra.mxu0 0.0
        %1514 = vmatprep.subr.mxu0 0.0
        %1515 = vmatpush1.msra.mxu0 0.0
        %1516 = vmatprep.subr.mxu0 0.0
        %1517 = vmatpush1.msra.mxu0 0.0
        %1518 = vmatprep.subr.mxu0 0.0
        %1519 = vmatpush1.msra.mxu0 0.0
        %1520 = vmatprep.subr.mxu0 0.0
        %1521 = vmatpush1.msra.mxu0 0.0
        %1522 = vmatprep.subr.mxu0 0.0
        %1523 = vmatpush1.msra.mxu0 0.0
        %1524 = vmatprep.subr.mxu0 0.0
        %1525 = vmatpush1.msra.mxu0 0.0
        %1526 = vmatprep.subr.mxu0 0.0
        %1527 = vmatpush1.msra.mxu0 0.0
        %1528 = vmatprep.subr.mxu0 0.0
        %1529 = vmatpush1.msra.mxu0 0.0
        %1530 = vmatprep.subr.mxu0 0.0
        %1531 = vmatpush1.msra.mxu0 0.0
        %1532 = vmatprep.subr.mxu0 0.0
        %1533 = vmatpush1.msra.mxu0 0.0
        %1534 = vmatprep.subr.mxu0 0.0
        %1535 = vmatpush1.msra.mxu0 0.0
        %1536 = vmatprep.subr.mxu0 0.0
        %1537 = vmatpush1.msra.mxu0 0.0
        %1538 = vmatprep.subr.mxu0 0.0
        %1539 = vmatpush1.msra.mxu0 0.0
        %1540 = vmatprep.subr.mxu0 0.0
        %1541 = vmatpush1.msra.mxu0 0.0
        %1542 = vmatprep.subr.mxu0 0.0
        %1543 = vmatpush1.msra.mxu0 0.0
        %1544 = vmatprep.subr.mxu0 0.0
        %1545 = vmatpush1.msra.mxu0 0.0
        %1546 = vmatprep.subr.mxu0 0.0
        %1547 = vmatpush1.msra.mxu0 0.0
        %1548 = vmatprep.mubr.f32.mxu0 0.0
        %1549 = vmatmul.mubr.f32.gmra.mrb[0].mxu0 %v1482
        %v1550 = vpop.f32.mrb[0].mxu0
        %v1551 = vadd.f32 %v1478, %v1550
        %v1552 = vpop.f32.mrb[0].mxu0
        %1553 = vdwg.mxu0
        %1554 = vrot.lane.b32.xlu0 %v984, 112
        %v1555 = vpop.permute.xlu0 %1554
        %1556 = vrot.lane.b32.xlu0 %v1069, 80
        %v1557 = vpop.permute.xlu0 %1556
        %v1558 = vsel %vm1078, %v1555, 0
        %v1560 = vsel %vm1078, %v1557, 0
        %1562 = vmatprep.subr.mxu0 0.0
        %1563 = vmatpush1.xpose.msra.mxu0 %v1560
        %1564 = vmatprep.subr.mxu0 0.0
        %1565 = vmatpush1.xpose.msra.mxu0 0.0
        %1566 = vmatprep.subr.mxu0 0.0
        %1567 = vmatpush1.xpose.msra.mxu0 0.0
        %1568 = vmatprep.subr.mxu0 0.0
        %1569 = vmatpush1.xpose.msra.mxu0 0.0
        %1570 = vmatprep.subr.mxu0 0.0
        %1571 = vmatpush1.xpose.msra.mxu0 0.0
        %1572 = vmatprep.subr.mxu0 0.0
        %1573 = vmatpush1.xpose.msra.mxu0 0.0
        %1574 = vmatprep.subr.mxu0 0.0
        %1575 = vmatpush1.xpose.msra.mxu0 0.0
        %1576 = vmatprep.subr.mxu0 0.0
        %1577 = vmatpush1.xpose.msra.mxu0 0.0
        %1578 = vmatprep.subr.mxu0 0.0
        %1579 = vmatpush1.xpose.msra.mxu0 0.0
        %1580 = vmatprep.subr.mxu0 0.0
        %1581 = vmatpush1.xpose.msra.mxu0 0.0
        %1582 = vmatprep.subr.mxu0 0.0
        %1583 = vmatpush1.xpose.msra.mxu0 0.0
        %1584 = vmatprep.subr.mxu0 0.0
        %1585 = vmatpush1.xpose.msra.mxu0 0.0
        %1586 = vmatprep.subr.mxu0 0.0
        %1587 = vmatpush1.xpose.msra.mxu0 0.0
        %1588 = vmatprep.subr.mxu0 0.0
        %1589 = vmatpush1.xpose.msra.mxu0 0.0
        %1590 = vmatprep.subr.mxu0 0.0
        %1591 = vmatpush1.xpose.msra.mxu0 0.0
        %1592 = vmatprep.subr.mxu0 0.0
        %1593 = vmatpush1.xpose.msra.mxu0 0.0
        %1594 = vmatprep.subr.mxu0 0.0
        %1595 = vmatpush1.xpose.msra.mxu0 0.0
        %1596 = vmatprep.subr.mxu0 0.0
        %1597 = vmatpush1.xpose.msra.mxu0 0.0
        %1598 = vmatprep.subr.mxu0 0.0
        %1599 = vmatpush1.xpose.msra.mxu0 0.0
        %1600 = vmatprep.subr.mxu0 0.0
        %1601 = vmatpush1.xpose.msra.mxu0 0.0
        %1602 = vmatprep.subr.mxu0 0.0
        %1603 = vmatpush1.xpose.msra.mxu0 0.0
        %1604 = vmatprep.subr.mxu0 0.0
        %1605 = vmatpush1.xpose.msra.mxu0 0.0
        %1606 = vmatprep.subr.mxu0 0.0
        %1607 = vmatpush1.xpose.msra.mxu0 0.0
        %1608 = vmatprep.subr.mxu0 0.0
        %1609 = vmatpush1.xpose.msra.mxu0 0.0
        %1610 = vmatprep.subr.mxu0 0.0
        %1611 = vmatpush1.xpose.msra.mxu0 0.0
        %1612 = vmatprep.subr.mxu0 0.0
        %1613 = vmatpush1.xpose.msra.mxu0 0.0
        %1614 = vmatprep.subr.mxu0 0.0
        %1615 = vmatpush1.xpose.msra.mxu0 0.0
        %1616 = vmatprep.subr.mxu0 0.0
        %1617 = vmatpush1.xpose.msra.mxu0 0.0
        %1618 = vmatprep.subr.mxu0 0.0
        %1619 = vmatpush1.xpose.msra.mxu0 0.0
        %1620 = vmatprep.subr.mxu0 0.0
        %1621 = vmatpush1.xpose.msra.mxu0 0.0
        %1622 = vmatprep.subr.mxu0 0.0
        %1623 = vmatpush1.xpose.msra.mxu0 0.0
        %1624 = vmatprep.subr.mxu0 0.0
        %1625 = vmatpush1.xpose.msra.mxu0 0.0
        %1626 = vmatprep.mubr.f32.mxu0 0.0
        %1627 = vmatmul.mubr.f32.gmra.mrb[0].mxu0 %v1558
        %v1628 = vpop.f32.mrb[0].mxu0
        %v1629 = vadd.f32 0.0, %v1628
        %v1630 = vpop.f32.mrb[0].mxu0
        %1631 = vdwg.mxu0
        %v1632 = vsel %vm1070, %v1629, -1e+30
        %v1633 = vsel %vm1078, %v1632, -inf
        %1634 = vmax.xlane.f32.xlu0 %v1633
        %v1635 = vpop.xlane.xlu0 %1634
        %v1636 = vsub.f32 %v1632, %v1635
        %v1637 = vmul.f32 %v1636, 1.442695
        %v1638 = vpow.pop %v1637
        %v1639 = vsel %vm1078, %v1638, 0.0
        %1640 = vadd.xlane.f32.xlu0 %v1639
        %v1641 = vpop.xlane.xlu0 %1640
        %1642 = vrot.lane.b32.xlu0 %v868, 48
        %v1643 = vpop.permute.xlu0 %1642
        %v1646 = vsel %vm1078, %v1638, 0
        %1648 = vmatprep.subr.mxu0 0.0
        %1649 = vmatpush1.msra.mxu0 %v1643
        %1650 = vmatprep.subr.mxu0 0.0
        %1651 = vmatpush1.msra.mxu0 0.0
        %1652 = vmatprep.subr.mxu0 0.0
        %1653 = vmatpush1.msra.mxu0 0.0
        %1654 = vmatprep.subr.mxu0 0.0
        %1655 = vmatpush1.msra.mxu0 0.0
        %1656 = vmatprep.subr.mxu0 0.0
        %1657 = vmatpush1.msra.mxu0 0.0
        %1658 = vmatprep.subr.mxu0 0.0
        %1659 = vmatpush1.msra.mxu0 0.0
        %1660 = vmatprep.subr.mxu0 0.0
        %1661 = vmatpush1.msra.mxu0 0.0
        %1662 = vmatprep.subr.mxu0 0.0
        %1663 = vmatpush1.msra.mxu0 0.0
        %1664 = vmatprep.subr.mxu0 0.0
        %1665 = vmatpush1.msra.mxu0 0.0
        %1666 = vmatprep.subr.mxu0 0.0
        %1667 = vmatpush1.msra.mxu0 0.0
        %1668 = vmatprep.subr.mxu0 0.0
        %1669 = vmatpush1.msra.mxu0 0.0
        %1670 = vmatprep.subr.mxu0 0.0
        %1671 = vmatpush1.msra.mxu0 0.0
        %1672 = vmatprep.subr.mxu0 0.0
        %1673 = vmatpush1.msra.mxu0 0.0
        %1674 = vmatprep.subr.mxu0 0.0
        %1675 = vmatpush1.msra.mxu0 0.0
        %1676 = vmatprep.subr.mxu0 0.0
        %1677 = vmatpush1.msra.mxu0 0.0
        %1678 = vmatprep.subr.mxu0 0.0
        %1679 = vmatpush1.msra.mxu0 0.0
        %1680 = vmatprep.subr.mxu0 0.0
        %1681 = vmatpush1.msra.mxu0 0.0
        %1682 = vmatprep.subr.mxu0 0.0
        %1683 = vmatpush1.msra.mxu0 0.0
        %1684 = vmatprep.subr.mxu0 0.0
        %1685 = vmatpush1.msra.mxu0 0.0
        %1686 = vmatprep.subr.mxu0 0.0
        %1687 = vmatpush1.msra.mxu0 0.0
        %1688 = vmatprep.subr.mxu0 0.0
        %1689 = vmatpush1.msra.mxu0 0.0
        %1690 = vmatprep.subr.mxu0 0.0
        %1691 = vmatpush1.msra.mxu0 0.0
        %1692 = vmatprep.subr.mxu0 0.0
        %1693 = vmatpush1.msra.mxu0 0.0
        %1694 = vmatprep.subr.mxu0 0.0
        %1695 = vmatpush1.msra.mxu0 0.0
        %1696 = vmatprep.subr.mxu0 0.0
        %1697 = vmatpush1.msra.mxu0 0.0
        %1698 = vmatprep.subr.mxu0 0.0
        %1699 = vmatpush1.msra.mxu0 0.0
        %1700 = vmatprep.subr.mxu0 0.0
        %1701 = vmatpush1.msra.mxu0 0.0
        %1702 = vmatprep.subr.mxu0 0.0
        %1703 = vmatpush1.msra.mxu0 0.0
        %1704 = vmatprep.subr.mxu0 0.0
        %1705 = vmatpush1.msra.mxu0 0.0
        %1706 = vmatprep.subr.mxu0 0.0
        %1707 = vmatpush1.msra.mxu0 0.0
        %1708 = vmatprep.subr.mxu0 0.0
        %1709 = vmatpush1.msra.mxu0 0.0
        %1710 = vmatprep.subr.mxu0 0.0
        %1711 = vmatpush1.msra.mxu0 0.0
        %1712 = vmatprep.mubr.f32.mxu0 0.0
        %1713 = vmatmul.mubr.f32.gmra.mrb[0].mxu0 %v1646
        %v1714 = vpop.f32.mrb[0].mxu0
        %v1715 = vadd.f32 0.0, %v1714
        %v1716 = vpop.f32.mrb[0].mxu0
        %1717 = vdwg.mxu0
        %v1718 = vrcp.pop %v1641
        %v1719 = vmul.f32 %v1715, %v1718
        %v1721 = vsel %vm1078, %v1719, 0
        %1723 = vmatprep.subr.mxu0 0.0
        %1724 = vmatpush1.msra.mxu0 %v1073
        %1725 = vmatprep.subr.mxu0 0.0
        %1726 = vmatpush1.msra.mxu0 0.0
        %1727 = vmatprep.subr.mxu0 0.0
        %1728 = vmatpush1.msra.mxu0 0.0
        %1729 = vmatprep.subr.mxu0 0.0
        %1730 = vmatpush1.msra.mxu0 0.0
        %1731 = vmatprep.subr.mxu0 0.0
        %1732 = vmatpush1.msra.mxu0 0.0
        %1733 = vmatprep.subr.mxu0 0.0
        %1734 = vmatpush1.msra.mxu0 0.0
        %1735 = vmatprep.subr.mxu0 0.0
        %1736 = vmatpush1.msra.mxu0 0.0
        %1737 = vmatprep.subr.mxu0 0.0
        %1738 = vmatpush1.msra.mxu0 0.0
        %1739 = vmatprep.subr.mxu0 0.0
        %1740 = vmatpush1.msra.mxu0 0.0
        %1741 = vmatprep.subr.mxu0 0.0
        %1742 = vmatpush1.msra.mxu0 0.0
        %1743 = vmatprep.subr.mxu0 0.0
        %1744 = vmatpush1.msra.mxu0 0.0
        %1745 = vmatprep.subr.mxu0 0.0
        %1746 = vmatpush1.msra.mxu0 0.0
        %1747 = vmatprep.subr.mxu0 0.0
        %1748 = vmatpush1.msra.mxu0 0.0
        %1749 = vmatprep.subr.mxu0 0.0
        %1750 = vmatpush1.msra.mxu0 0.0
        %1751 = vmatprep.subr.mxu0 0.0
        %1752 = vmatpush1.msra.mxu0 0.0
        %1753 = vmatprep.subr.mxu0 0.0
        %1754 = vmatpush1.msra.mxu0 0.0
        %1755 = vmatprep.subr.mxu0 0.0
        %1756 = vmatpush1.msra.mxu0 0.0
        %1757 = vmatprep.subr.mxu0 0.0
        %1758 = vmatpush1.msra.mxu0 0.0
        %1759 = vmatprep.subr.mxu0 0.0
        %1760 = vmatpush1.msra.mxu0 0.0
        %1761 = vmatprep.subr.mxu0 0.0
        %1762 = vmatpush1.msra.mxu0 0.0
        %1763 = vmatprep.subr.mxu0 0.0
        %1764 = vmatpush1.msra.mxu0 0.0
        %1765 = vmatprep.subr.mxu0 0.0
        %1766 = vmatpush1.msra.mxu0 0.0
        %1767 = vmatprep.subr.mxu0 0.0
        %1768 = vmatpush1.msra.mxu0 0.0
        %1769 = vmatprep.subr.mxu0 0.0
        %1770 = vmatpush1.msra.mxu0 0.0
        %1771 = vmatprep.subr.mxu0 0.0
        %1772 = vmatpush1.msra.mxu0 0.0
        %1773 = vmatprep.subr.mxu0 0.0
        %1774 = vmatpush1.msra.mxu0 0.0
        %1775 = vmatprep.subr.mxu0 0.0
        %1776 = vmatpush1.msra.mxu0 0.0
        %1777 = vmatprep.subr.mxu0 0.0
        %1778 = vmatpush1.msra.mxu0 0.0
        %1779 = vmatprep.subr.mxu0 0.0
        %1780 = vmatpush1.msra.mxu0 0.0
        %1781 = vmatprep.subr.mxu0 0.0
        %1782 = vmatpush1.msra.mxu0 0.0
        %1783 = vmatprep.subr.mxu0 0.0
        %1784 = vmatpush1.msra.mxu0 0.0
        %1785 = vmatprep.subr.mxu0 0.0
        %1786 = vmatpush1.msra.mxu0 0.0
        %1787 = vmatprep.mubr.f32.mxu0 0.0
        %1788 = vmatmul.mubr.f32.gmra.mrb[0].mxu0 %v1721
        %v1789 = vpop.f32.mrb[0].mxu0
        %v1790 = vadd.f32 0.0, %v1789
        %v1791 = vpop.f32.mrb[0].mxu0
        %1792 = vdwg.mxu0
        %v1793 = vadd.f32 %v1551, %v1790
        %1794 = vrot.lane.b32.xlu0 %v984, 104
        %v1795 = vpop.permute.xlu0 %1794
        %1796 = vrot.lane.b32.xlu0 %v1069, 72
        %v1797 = vpop.permute.xlu0 %1796
        %v1798 = vsel %vm1078, %v1795, 0
        %v1800 = vsel %vm1078, %v1797, 0
        %1802 = vmatprep.subr.mxu0 0.0
        %1803 = vmatpush1.xpose.msra.mxu0 %v1800
        %1804 = vmatprep.subr.mxu0 0.0
        %1805 = vmatpush1.xpose.msra.mxu0 0.0
        %1806 = vmatprep.subr.mxu0 0.0
        %1807 = vmatpush1.xpose.msra.mxu0 0.0
        %1808 = vmatprep.subr.mxu0 0.0
        %1809 = vmatpush1.xpose.msra.mxu0 0.0
        %1810 = vmatprep.subr.mxu0 0.0
        %1811 = vmatpush1.xpose.msra.mxu0 0.0
        %1812 = vmatprep.subr.mxu0 0.0
        %1813 = vmatpush1.xpose.msra.mxu0 0.0
        %1814 = vmatprep.subr.mxu0 0.0
        %1815 = vmatpush1.xpose.msra.mxu0 0.0
        %1816 = vmatprep.subr.mxu0 0.0
        %1817 = vmatpush1.xpose.msra.mxu0 0.0
        %1818 = vmatprep.subr.mxu0 0.0
        %1819 = vmatpush1.xpose.msra.mxu0 0.0
        %1820 = vmatprep.subr.mxu0 0.0
        %1821 = vmatpush1.xpose.msra.mxu0 0.0
        %1822 = vmatprep.subr.mxu0 0.0
        %1823 = vmatpush1.xpose.msra.mxu0 0.0
        %1824 = vmatprep.subr.mxu0 0.0
        %1825 = vmatpush1.xpose.msra.mxu0 0.0
        %1826 = vmatprep.subr.mxu0 0.0
        %1827 = vmatpush1.xpose.msra.mxu0 0.0
        %1828 = vmatprep.subr.mxu0 0.0
        %1829 = vmatpush1.xpose.msra.mxu0 0.0
        %1830 = vmatprep.subr.mxu0 0.0
        %1831 = vmatpush1.xpose.msra.mxu0 0.0
        %1832 = vmatprep.subr.mxu0 0.0
        %1833 = vmatpush1.xpose.msra.mxu0 0.0
        %1834 = vmatprep.subr.mxu0 0.0
        %1835 = vmatpush1.xpose.msra.mxu0 0.0
        %1836 = vmatprep.subr.mxu0 0.0
        %1837 = vmatpush1.xpose.msra.mxu0 0.0
        %1838 = vmatprep.subr.mxu0 0.0
        %1839 = vmatpush1.xpose.msra.mxu0 0.0
        %1840 = vmatprep.subr.mxu0 0.0
        %1841 = vmatpush1.xpose.msra.mxu0 0.0
        %1842 = vmatprep.subr.mxu0 0.0
        %1843 = vmatpush1.xpose.msra.mxu0 0.0
        %1844 = vmatprep.subr.mxu0 0.0
        %1845 = vmatpush1.xpose.msra.mxu0 0.0
        %1846 = vmatprep.subr.mxu0 0.0
        %1847 = vmatpush1.xpose.msra.mxu0 0.0
        %1848 = vmatprep.subr.mxu0 0.0
        %1849 = vmatpush1.xpose.msra.mxu0 0.0
        %1850 = vmatprep.subr.mxu0 0.0
        %1851 = vmatpush1.xpose.msra.mxu0 0.0
        %1852 = vmatprep.subr.mxu0 0.0
        %1853 = vmatpush1.xpose.msra.mxu0 0.0
        %1854 = vmatprep.subr.mxu0 0.0
        %1855 = vmatpush1.xpose.msra.mxu0 0.0
        %1856 = vmatprep.subr.mxu0 0.0
        %1857 = vmatpush1.xpose.msra.mxu0 0.0
        %1858 = vmatprep.subr.mxu0 0.0
        %1859 = vmatpush1.xpose.msra.mxu0 0.0
        %1860 = vmatprep.subr.mxu0 0.0
        %1861 = vmatpush1.xpose.msra.mxu0 0.0
        %1862 = vmatprep.subr.mxu0 0.0
        %1863 = vmatpush1.xpose.msra.mxu0 0.0
        %1864 = vmatprep.subr.mxu0 0.0
        %1865 = vmatpush1.xpose.msra.mxu0 0.0
        %1866 = vmatprep.mubr.f32.mxu0 0.0
        %1867 = vmatmul.mubr.f32.gmra.mrb[0].mxu0 %v1798
        %v1868 = vpop.f32.mrb[0].mxu0
        %v1869 = vadd.f32 0.0, %v1868
        %v1870 = vpop.f32.mrb[0].mxu0
        %1871 = vdwg.mxu0
        %v1872 = vsel %vm1070, %v1869, -1e+30
        %v1873 = vsel %vm1078, %v1872, -inf
        %1874 = vmax.xlane.f32.xlu0 %v1873
        %v1875 = vpop.xlane.xlu0 %1874
        %v1876 = vsub.f32 %v1872, %v1875
        %v1877 = vmul.f32 %v1876, 1.442695
        %v1878 = vpow.pop %v1877
        %v1879 = vsel %vm1078, %v1878, 0.0
        %1880 = vadd.xlane.f32.xlu0 %v1879
        %v1881 = vpop.xlane.xlu0 %1880
        %1882 = vrot.lane.b32.xlu0 %v868, 40
        %v1883 = vpop.permute.xlu0 %1882
        %v1886 = vsel %vm1078, %v1878, 0
        %1888 = vmatprep.subr.mxu0 0.0
        %1889 = vmatpush1.msra.mxu0 %v1883
        %1890 = vmatprep.subr.mxu0 0.0
        %1891 = vmatpush1.msra.mxu0 0.0
        %1892 = vmatprep.subr.mxu0 0.0
        %1893 = vmatpush1.msra.mxu0 0.0
        %1894 = vmatprep.subr.mxu0 0.0
        %1895 = vmatpush1.msra.mxu0 0.0
        %1896 = vmatprep.subr.mxu0 0.0
        %1897 = vmatpush1.msra.mxu0 0.0
        %1898 = vmatprep.subr.mxu0 0.0
        %1899 = vmatpush1.msra.mxu0 0.0
        %1900 = vmatprep.subr.mxu0 0.0
        %1901 = vmatpush1.msra.mxu0 0.0
        %1902 = vmatprep.subr.mxu0 0.0
        %1903 = vmatpush1.msra.mxu0 0.0
        %1904 = vmatprep.subr.mxu0 0.0
        %1905 = vmatpush1.msra.mxu0 0.0
        %1906 = vmatprep.subr.mxu0 0.0
        %1907 = vmatpush1.msra.mxu0 0.0
        %1908 = vmatprep.subr.mxu0 0.0
        %1909 = vmatpush1.msra.mxu0 0.0
        %1910 = vmatprep.subr.mxu0 0.0
        %1911 = vmatpush1.msra.mxu0 0.0
        %1912 = vmatprep.subr.mxu0 0.0
        %1913 = vmatpush1.msra.mxu0 0.0
        %1914 = vmatprep.subr.mxu0 0.0
        %1915 = vmatpush1.msra.mxu0 0.0
        %1916 = vmatprep.subr.mxu0 0.0
        %1917 = vmatpush1.msra.mxu0 0.0
        %1918 = vmatprep.subr.mxu0 0.0
        %1919 = vmatpush1.msra.mxu0 0.0
        %1920 = vmatprep.subr.mxu0 0.0
        %1921 = vmatpush1.msra.mxu0 0.0
        %1922 = vmatprep.subr.mxu0 0.0
        %1923 = vmatpush1.msra.mxu0 0.0
        %1924 = vmatprep.subr.mxu0 0.0
        %1925 = vmatpush1.msra.mxu0 0.0
        %1926 = vmatprep.subr.mxu0 0.0
        %1927 = vmatpush1.msra.mxu0 0.0
        %1928 = vmatprep.subr.mxu0 0.0
        %1929 = vmatpush1.msra.mxu0 0.0
        %1930 = vmatprep.subr.mxu0 0.0
        %1931 = vmatpush1.msra.mxu0 0.0
        %1932 = vmatprep.subr.mxu0 0.0
        %1933 = vmatpush1.msra.mxu0 0.0
        %1934 = vmatprep.subr.mxu0 0.0
        %1935 = vmatpush1.msra.mxu0 0.0
        %1936 = vmatprep.subr.mxu0 0.0
        %1937 = vmatpush1.msra.mxu0 0.0
        %1938 = vmatprep.subr.mxu0 0.0
        %1939 = vmatpush1.msra.mxu0 0.0
        %1940 = vmatprep.subr.mxu0 0.0
        %1941 = vmatpush1.msra.mxu0 0.0
        %1942 = vmatprep.subr.mxu0 0.0
        %1943 = vmatpush1.msra.mxu0 0.0
        %1944 = vmatprep.subr.mxu0 0.0
        %1945 = vmatpush1.msra.mxu0 0.0
        %1946 = vmatprep.subr.mxu0 0.0
        %1947 = vmatpush1.msra.mxu0 0.0
        %1948 = vmatprep.subr.mxu0 0.0
        %1949 = vmatpush1.msra.mxu0 0.0
        %1950 = vmatprep.subr.mxu0 0.0
        %1951 = vmatpush1.msra.mxu0 0.0
        %1952 = vmatprep.mubr.f32.mxu0 0.0
        %1953 = vmatmul.mubr.f32.gmra.mrb[0].mxu0 %v1886
        %v1954 = vpop.f32.mrb[0].mxu0
        %v1955 = vadd.f32 0.0, %v1954
        %v1956 = vpop.f32.mrb[0].mxu0
        %1957 = vdwg.mxu0
        %v1958 = vrcp.pop %v1881
        %v1959 = vmul.f32 %v1955, %v1958
        %v1961 = vsel %vm1078, %v1959, 0
        %1963 = vmatprep.subr.mxu0 0.0
        %1964 = vmatpush1.msra.mxu0 %v1074
        %1965 = vmatprep.subr.mxu0 0.0
        %1966 = vmatpush1.msra.mxu0 0.0
        %1967 = vmatprep.subr.mxu0 0.0
        %1968 = vmatpush1.msra.mxu0 0.0
        %1969 = vmatprep.subr.mxu0 0.0
        %1970 = vmatpush1.msra.mxu0 0.0
        %1971 = vmatprep.subr.mxu0 0.0
        %1972 = vmatpush1.msra.mxu0 0.0
        %1973 = vmatprep.subr.mxu0 0.0
        %1974 = vmatpush1.msra.mxu0 0.0
        %1975 = vmatprep.subr.mxu0 0.0
        %1976 = vmatpush1.msra.mxu0 0.0
        %1977 = vmatprep.subr.mxu0 0.0
        %1978 = vmatpush1.msra.mxu0 0.0
        %1979 = vmatprep.subr.mxu0 0.0
        %1980 = vmatpush1.msra.mxu0 0.0
        %1981 = vmatprep.subr.mxu0 0.0
        %1982 = vmatpush1.msra.mxu0 0.0
        %1983 = vmatprep.subr.mxu0 0.0
        %1984 = vmatpush1.msra.mxu0 0.0
        %1985 = vmatprep.subr.mxu0 0.0
        %1986 = vmatpush1.msra.mxu0 0.0
        %1987 = vmatprep.subr.mxu0 0.0
        %1988 = vmatpush1.msra.mxu0 0.0
        %1989 = vmatprep.subr.mxu0 0.0
        %1990 = vmatpush1.msra.mxu0 0.0
        %1991 = vmatprep.subr.mxu0 0.0
        %1992 = vmatpush1.msra.mxu0 0.0
        %1993 = vmatprep.subr.mxu0 0.0
        %1994 = vmatpush1.msra.mxu0 0.0
        %1995 = vmatprep.subr.mxu0 0.0
        %1996 = vmatpush1.msra.mxu0 0.0
        %1997 = vmatprep.subr.mxu0 0.0
        %1998 = vmatpush1.msra.mxu0 0.0
        %1999 = vmatprep.subr.mxu0 0.0
        %2000 = vmatpush1.msra.mxu0 0.0
        %2001 = vmatprep.subr.mxu0 0.0
        %2002 = vmatpush1.msra.mxu0 0.0
        %2003 = vmatprep.subr.mxu0 0.0
        %2004 = vmatpush1.msra.mxu0 0.0
        %2005 = vmatprep.subr.mxu0 0.0
        %2006 = vmatpush1.msra.mxu0 0.0
        %2007 = vmatprep.subr.mxu0 0.0
        %2008 = vmatpush1.msra.mxu0 0.0
        %2009 = vmatprep.subr.mxu0 0.0
        %2010 = vmatpush1.msra.mxu0 0.0
        %2011 = vmatprep.subr.mxu0 0.0
        %2012 = vmatpush1.msra.mxu0 0.0
        %2013 = vmatprep.subr.mxu0 0.0
        %2014 = vmatpush1.msra.mxu0 0.0
        %2015 = vmatprep.subr.mxu0 0.0
        %2016 = vmatpush1.msra.mxu0 0.0
        %2017 = vmatprep.subr.mxu0 0.0
        %2018 = vmatpush1.msra.mxu0 0.0
        %2019 = vmatprep.subr.mxu0 0.0
        %2020 = vmatpush1.msra.mxu0 0.0
        %2021 = vmatprep.subr.mxu0 0.0
        %2022 = vmatpush1.msra.mxu0 0.0
        %2023 = vmatprep.subr.mxu0 0.0
        %2024 = vmatpush1.msra.mxu0 0.0
        %2025 = vmatprep.subr.mxu0 0.0
        %2026 = vmatpush1.msra.mxu0 0.0
        %2027 = vmatprep.mubr.f32.mxu0 0.0
        %2028 = vmatmul.mubr.f32.gmra.mrb[0].mxu0 %v1961
        %v2029 = vpop.f32.mrb[0].mxu0
        %v2030 = vadd.f32 0.0, %v2029
        %v2031 = vpop.f32.mrb[0].mxu0
        %2032 = vdwg.mxu0
        %v2033 = vadd.f32 %v1793, %v2030
        %v2034 = vld [vmem:[%s725] sm:$0x1]
        %v2036 = vlaneseq
        %v2037 = vshrl.u32 %v2036, 7
        %v2038 = vsub.s32 0, %v2037
        %v2039 = vrot.slane %v2034, %v2038
        %v2041 = vadd.f32 %v2033, %v2039
        %v2042 = vadd.f32 %v755, %v2041
        %v2043 = vld [vmem:[%s728] sm:$0x1]
        %v2044 = vld [vmem:[%s731] sm:$0x1]
        %v2045 = vsel %vm758, %v2042, 0.0
        %2046 = vadd.xlane.f32.xlu0 %v2045
        %v2047 = vpop.xlane.xlu0 %2046
        %v2048 = vmul.f32 %v2047, %v762
        %v2049 = vsub.f32 %v2042, %v2048
        %v2050 = vmul.f32 %v2049, %v2049
        %v2051 = vsel %vm758, %v2050, 0.0
        %2052 = vadd.xlane.f32.xlu0 %v2051
        %v2053 = vpop.xlane.xlu0 %2052
        %v2054 = vmul.f32 %v2053, %v762
        %v2055 = vadd.f32 %v2054, 1e-05
        %v2056 = vrsqrt.pop %v2055
        %v2057 = vmul.f32 %v2049, %v2056
        %v2059 = vlaneseq
        %v2060 = vshrl.u32 %v2059, 7
        %v2061 = vsub.s32 0, %v2060
        %v2062 = vrot.slane %v2043, %v2061
        %v2064 = vmul.f32 %v2057, %v2062
        %v2066 = vlaneseq
        %v2067 = vshrl.u32 %v2066, 7
        %v2068 = vsub.s32 0, %v2067
        %v2069 = vrot.slane %v2044, %v2068
        %v2071 = vadd.f32 %v2064, %v2069
        %v2072 = vld [vmem:[%s736] sm:$0xff]
        %v2073 = vld [vmem:[%s736 + $0x8] sm:$0xff]
        %v2074 = vld [vmem:[%s736 + $0x10] sm:$0xff]
        %v2075 = vld [vmem:[%s736 + $0x18] sm:$0xff]
        %v2076 = vld [vmem:[%s739] sm:$0x1]
        %v2078 = vlaneseq
        %v2079 = vshrl.u32 %v2078, 7
        %v2080 = vsub.s32 0, %v2079
        %v2081 = vrot.slane %v2076, %v2080
        %v2084 = vsel %vm758, %v2071, 0
        %2086 = vmatprep.subr.mxu0 0.0
        %2087 = vmatpush1.msra.mxu0 %v2072
        %2088 = vmatprep.subr.mxu0 0.0
        %2089 = vmatpush1.msra.mxu0 %v2073
        %2090 = vmatprep.subr.mxu0 0.0
        %2091 = vmatpush1.msra.mxu0 %v2074
        %2092 = vmatprep.subr.mxu0 0.0
        %2093 = vmatpush1.msra.mxu0 %v2075
        %2094 = vmatprep.subr.mxu0 0.0
        %2095 = vmatpush1.msra.mxu0 0.0
        %2096 = vmatprep.subr.mxu0 0.0
        %2097 = vmatpush1.msra.mxu0 0.0
        %2098 = vmatprep.subr.mxu0 0.0
        %2099 = vmatpush1.msra.mxu0 0.0
        %2100 = vmatprep.subr.mxu0 0.0
        %2101 = vmatpush1.msra.mxu0 0.0
        %2102 = vmatprep.subr.mxu0 0.0
        %2103 = vmatpush1.msra.mxu0 0.0
        %2104 = vmatprep.subr.mxu0 0.0
        %2105 = vmatpush1.msra.mxu0 0.0
        %2106 = vmatprep.subr.mxu0 0.0
        %2107 = vmatpush1.msra.mxu0 0.0
        %2108 = vmatprep.subr.mxu0 0.0
        %2109 = vmatpush1.msra.mxu0 0.0
        %2110 = vmatprep.subr.mxu0 0.0
        %2111 = vmatpush1.msra.mxu0 0.0
        %2112 = vmatprep.subr.mxu0 0.0
        %2113 = vmatpush1.msra.mxu0 0.0
        %2114 = vmatprep.subr.mxu0 0.0
        %2115 = vmatpush1.msra.mxu0 0.0
        %2116 = vmatprep.subr.mxu0 0.0
        %2117 = vmatpush1.msra.mxu0 0.0
        %2118 = vmatprep.subr.mxu0 0.0
        %2119 = vmatpush1.msra.mxu0 0.0
        %2120 = vmatprep.subr.mxu0 0.0
        %2121 = vmatpush1.msra.mxu0 0.0
        %2122 = vmatprep.subr.mxu0 0.0
        %2123 = vmatpush1.msra.mxu0 0.0
        %2124 = vmatprep.subr.mxu0 0.0
        %2125 = vmatpush1.msra.mxu0 0.0
        %2126 = vmatprep.subr.mxu0 0.0
        %2127 = vmatpush1.msra.mxu0 0.0
        %2128 = vmatprep.subr.mxu0 0.0
        %2129 = vmatpush1.msra.mxu0 0.0
        %2130 = vmatprep.subr.mxu0 0.0
        %2131 = vmatpush1.msra.mxu0 0.0
        %2132 = vmatprep.subr.mxu0 0.0
        %2133 = vmatpush1.msra.mxu0 0.0
        %2134 = vmatprep.subr.mxu0 0.0
        %2135 = vmatpush1.msra.mxu0 0.0
        %2136 = vmatprep.subr.mxu0 0.0
        %2137 = vmatpush1.msra.mxu0 0.0
        %2138 = vmatprep.subr.mxu0 0.0
        %2139 = vmatpush1.msra.mxu0 0.0
        %2140 = vmatprep.subr.mxu0 0.0
        %2141 = vmatpush1.msra.mxu0 0.0
        %2142 = vmatprep.subr.mxu0 0.0
        %2143 = vmatpush1.msra.mxu0 0.0
        %2144 = vmatprep.subr.mxu0 0.0
        %2145 = vmatpush1.msra.mxu0 0.0
        %2146 = vmatprep.subr.mxu0 0.0
        %2147 = vmatpush1.msra.mxu0 0.0
        %2148 = vmatprep.subr.mxu0 0.0
        %2149 = vmatpush1.msra.mxu0 0.0
        %2150 = vmatprep.mubr.f32.mxu0 0.0
        %2151 = vmatmul.mubr.f32.gmra.mrb[0].mxu0 %v2084
        %v2152 = vpop.f32.mrb[0].mxu0
        %v2153 = vadd.f32 %v2081, %v2152
        %v2154 = vpop.f32.mrb[0].mxu0
        %2155 = vdwg.mxu0
        %v2156 = vmul.f32 %v2153, %v2153
        %v2157 = vmul.f32 %v2153, %v2156
        %v2158 = vmul.f32 %v2157, 0.044715
        %v2159 = vadd.f32 %v2153, %v2158
        %v2160 = vmul.f32 %v2159, 0.7978846
        %v2161 = vtanh.pop %v2160
        %v2162 = vadd.f32 %v2161, 1.0
        %v2163 = vmul.f32 %v2162, 0.5
        %v2164 = vmul.f32 %v2153, %v2163
        %v2165 = vld [vmem:[%s744] sm:$0xff]
        %v2166 = vld [vmem:[%s744 + $0x8] sm:$0xff]
        %v2167 = vld [vmem:[%s744 + $0x10] sm:$0xff]
        %v2168 = vld [vmem:[%s744 + $0x18] sm:$0xff]
        %v2169 = vld [vmem:[%s744 + $0x20] sm:$0xff]
        %v2170 = vld [vmem:[%s744 + $0x28] sm:$0xff]
        %v2171 = vld [vmem:[%s744 + $0x30] sm:$0xff]
        %v2172 = vld [vmem:[%s744 + $0x38] sm:$0xff]
        %v2173 = vld [vmem:[%s747] sm:$0x1]
        %v2175 = vlaneseq
        %v2176 = vshrl.u32 %v2175, 7
        %v2177 = vsub.s32 0, %v2176
        %v2178 = vrot.slane %v2173, %v2177
        %vm2180 = vcmask 523264
        %v2182 = vsel %vm2180, %v2164, 0
        %2184 = vmatprep.subr.mxu0 0.0
        %2185 = vmatpush1.msra.mxu0 %v2165
        %2186 = vmatprep.subr.mxu0 0.0
        %2187 = vmatpush1.msra.mxu0 %v2166
        %2188 = vmatprep.subr.mxu0 0.0
        %2189 = vmatpush1.msra.mxu0 %v2167
        %2190 = vmatprep.subr.mxu0 0.0
        %2191 = vmatpush1.msra.mxu0 %v2168
        %2192 = vmatprep.subr.mxu0 0.0
        %2193 = vmatpush1.msra.mxu0 %v2169
        %2194 = vmatprep.subr.mxu0 0.0
        %2195 = vmatpush1.msra.mxu0 %v2170
        %2196 = vmatprep.subr.mxu0 0.0
        %2197 = vmatpush1.msra.mxu0 %v2171
        %2198 = vmatprep.subr.mxu0 0.0
        %2199 = vmatpush1.msra.mxu0 %v2172
        %2200 = vmatprep.subr.mxu0 0.0
        %2201 = vmatpush1.msra.mxu0 0.0
        %2202 = vmatprep.subr.mxu0 0.0
        %2203 = vmatpush1.msra.mxu0 0.0
        %2204 = vmatprep.subr.mxu0 0.0
        %2205 = vmatpush1.msra.mxu0 0.0
        %2206 = vmatprep.subr.mxu0 0.0
        %2207 = vmatpush1.msra.mxu0 0.0
        %2208 = vmatprep.subr.mxu0 0.0
        %2209 = vmatpush1.msra.mxu0 0.0
        %2210 = vmatprep.subr.mxu0 0.0
        %2211 = vmatpush1.msra.mxu0 0.0
        %2212 = vmatprep.subr.mxu0 0.0
        %2213 = vmatpush1.msra.mxu0 0.0
        %2214 = vmatprep.subr.mxu0 0.0
        %2215 = vmatpush1.msra.mxu0 0.0
        %2216 = vmatprep.subr.mxu0 0.0
        %2217 = vmatpush1.msra.mxu0 0.0
        %2218 = vmatprep.subr.mxu0 0.0
        %2219 = vmatpush1.msra.mxu0 0.0
        %2220 = vmatprep.subr.mxu0 0.0
        %2221 = vmatpush1.msra.mxu0 0.0
        %2222 = vmatprep.subr.mxu0 0.0
        %2223 = vmatpush1.msra.mxu0 0.0
        %2224 = vmatprep.subr.mxu0 0.0
        %2225 = vmatpush1.msra.mxu0 0.0
        %2226 = vmatprep.subr.mxu0 0.0
        %2227 = vmatpush1.msra.mxu0 0.0
        %2228 = vmatprep.subr.mxu0 0.0
        %2229 = vmatpush1.msra.mxu0 0.0
        %2230 = vmatprep.subr.mxu0 0.0
        %2231 = vmatpush1.msra.mxu0 0.0
        %2232 = vmatprep.subr.mxu0 0.0
        %2233 = vmatpush1.msra.mxu0 0.0
        %2234 = vmatprep.subr.mxu0 0.0
        %2235 = vmatpush1.msra.mxu0 0.0
        %2236 = vmatprep.subr.mxu0 0.0
        %2237 = vmatpush1.msra.mxu0 0.0
        %2238 = vmatprep.subr.mxu0 0.0
        %2239 = vmatpush1.msra.mxu0 0.0
        %2240 = vmatprep.subr.mxu0 0.0
        %2241 = vmatpush1.msra.mxu0 0.0
        %2242 = vmatprep.subr.mxu0 0.0
        %2243 = vmatpush1.msra.mxu0 0.0
        %2244 = vmatprep.subr.mxu0 0.0
        %2245 = vmatpush1.msra.mxu0 0.0
        %2246 = vmatprep.subr.mxu0 0.0
        %2247 = vmatpush1.msra.mxu0 0.0
        %2248 = vmatprep.mubr.f32.mxu0 0.0
        %2249 = vmatmul.mubr.f32.gmra.mrb[0].mxu0 %v2182
        %v2250 = vpop.f32.mrb[0].mxu0
        %v2251 = vadd.f32 %v2178, %v2250
        %v2252 = vpop.f32.mrb[0].mxu0
        %2253 = vdwg.mxu0
        %v2254 = vadd.f32 %v2042, %v2251
        %2255 = vst.msk [vmem:[#allocation2] sm:$0xff] %vm758, %v2254
        %p2256 = scmp.eq.s32.totalorder %s36, 1
        // Predicated region
        $region93: #{_lambda_.1} parent=87 // pred_check
          %p2257 = pneg %p2256
        $region94: #{_lambda_.1} parent=87 // pred_check_branch
          %2259 = sbr.rel (%p2257) target = $region96
        $region95: #{_lambda_.1} parent=87 // pred_region
          %v2260 = vld [vmem:[%s15] sm:$0x1]
          %v2261 = vld [vmem:[%s16] sm:$0x1]
          %v2262 = vsel %vm758, %v2254, 0.0
          %2263 = vadd.xlane.f32.xlu0 %v2262
          %v2264 = vpop.xlane.xlu0 %2263
          %v2265 = vmul.f32 %v2264, %v762
          %v2266 = vsub.f32 %v2254, %v2265
          %v2267 = vmul.f32 %v2266, %v2266
          %v2268 = vsel %vm758, %v2267, 0.0
          %2269 = vadd.xlane.f32.xlu0 %v2268
          %v2270 = vpop.xlane.xlu0 %2269
          %v2271 = vmul.f32 %v2270, %v762
          %v2272 = vadd.f32 %v2271, 1e-05
          %v2273 = vrsqrt.pop %v2272
          %v2274 = vmul.f32 %v2266, %v2273
          %v2276 = vlaneseq
          %v2277 = vshrl.u32 %v2276, 7
          %v2278 = vsub.s32 0, %v2277
          %v2279 = vrot.slane %v2260, %v2278
          %v2281 = vmul.f32 %v2274, %v2279
          %v2283 = vlaneseq
          %v2284 = vshrl.u32 %v2283, 7
          %v2285 = vsub.s32 0, %v2284
          %v2286 = vrot.slane %v2261, %v2285
          %v2288 = vadd.f32 %v2281, %v2286
          %2289 = vst.msk [vmem:[%s699] sm:$0xff] %vm758, %v2288
        $region96: #{_lambda_.1} parent=87 // pred_fallthru
          _
        %s2290 = sand.u32 %s473, 1
        %s2291 = scalar_lea.sflag [#allocation4], %s2290
        %s2292 = sand.u32 %s473, 1
        %s2293 = smul.addr %s2292, 8
        %s2294 = scalar_lea.vmem [#allocation3], %s2293
        // Predicated region
        $region97: #{_lambda_.1} parent=87 // pred_check
          %p2295 = pneg %p483
        $region98: #{_lambda_.1} parent=87 // pred_check_branch
          %2297 = sbr.rel (%p2295) target = $region100
        $region99: #{_lambda_.1} parent=87 // pred_region
          %s2299 = ssub.s32 128, 128
          %2300 = vsyncadd %s2291, %s2299
          %s2301 = smul.addr %s35, 128
          %s2302 = scalar_lea.hbm %s17, %s2301
          %s2304 = sshll.u32 %s2294, 4
          %s2305 = int_to_ptr.vmem [resolvable:$true] %s2304
          %2307 = dma.vmem_to_hbm [thread:$0]  %s2305, 128, %s2302, %s2291
        $region100: #{_lambda_.1} parent=87 // pred_fallthru
          _
      $region88: #{_lambda_.1} parent=5 // pred_fallthru
        _
      %p2308 = scmp.le.s32.totalorder 2, %s26
      // Predicated region
      $region101: #{_lambda_.1} parent=5 // pred_check
        %p2309 = pneg %p2308
      $region102: #{_lambda_.1} parent=5 // pred_check_branch
        %2311 = sbr.rel (%p2309) target = $region104
      $region103: #{_lambda_.1} parent=5 // pred_region
        %s2312 = ssub.s32 %s26, 2
        // Predicated region
        $region105: #{_lambda_.1} parent=103 // pred_check
          %p2313 = pneg %p489
        $region106: #{_lambda_.1} parent=103 // pred_check_branch
          %2315 = sbr.rel (%p2313) target = $region108
        $region107: #{_lambda_.1} parent=103 // pred_region
          %s2316 = sand.u32 %s474, 1
          %s2317 = scalar_lea.sflag [#allocation4], %s2316
          %s2318 = sand.u32 %s474, 1
          %s2319 = smul.addr %s2318, 8
          %s2320 = scalar_lea.vmem [#allocation3], %s2319
          %2321 = dma.done %s2317, 128
        $region108: #{_lambda_.1} parent=103 // pred_fallthru
          _
      $region104: #{_lambda_.1} parent=5 // pred_fallthru
        _
    $region6: #{_lambda_.1} parent=1 // loop_footer
      %s30 = sadd.s32 1, %s26
    $region7: #{_lambda_.1} parent=1 // loop_footer_branch
      %25 = sbr.rel target = $region3
    $region8: #{_lambda_.1} parent=1 // loop_exit
      _
    %2322 = vsyncpa [#allocation4], 1
    %s2323 = scalar_lea.sflag [#allocation4], 1
    %2324 = vsyncpa %s2323, 1

</llo_original>
